<compile_context>
chip_gen: v5e
topology: v5e:2x2
jax: 0.10.0
libtpu: 0.0.40
codegen_flags: <defaults>
</compile_context>

<pallas_src>
import math

import jax
import jax.numpy as jnp
from jax import lax
from jax.experimental import pallas as pl
from jax.experimental.pallas import tpu as pltpu


def spatio_temporal_conv(x, w_spatial, w_temporal,
                         gamma1, beta1, mean1, var1,
                         gamma2, beta2, mean2, var2,
                         kernel_size=3, padding=1, eps=1e-5):
    """Fused R(2+1)D block forward (eval-mode BN). NCDHW in / NCDHW out.

    x          : (N, Cin, T, H, W) float32
    w_spatial  : (Cmid, Cin, 1, KH, KW)  PyTorch Conv3d layout (bias=False)
    w_temporal : (Cout, Cmid, KT, 1, 1)
    gamma/beta/mean/var : BatchNorm3d running stats + affine (eval mode).
    """
    N, Cin, T, H, W = x.shape
    KT = KH = KW = int(kernel_size)
    p = int(padding)
    Cmid = w_spatial.shape[0]
    Cout = w_temporal.shape[0]

    Hp, Wp = H + 2 * p, W + 2 * p
    Ho, Wo = Hp - KH + 1, Wp - KW + 1
    Tp = T + 2 * p
    To = Tp - KT + 1
    Kc = KH * KW * Cin

    J = Ho * Wo
    Jp = ((J + 127) // 128) * 128          # lane-dense flattened spatial width

    # static sanity: the largest temporal-window read must stay inside the scratch
    assert (KT - 1) + To <= Tp, (KT, To, Tp)

    f32, bf16 = jnp.float32, jnp.bfloat16

    # ---- fold eval-mode BN scale into the conv weights (host side) ----
    scale1 = gamma1 / jnp.sqrt(var1 + eps)
    shift1 = (beta1 - mean1 * scale1).astype(f32).reshape(Cmid, 1)
    scale2 = gamma2 / jnp.sqrt(var2 + eps)
    shift2 = (beta2 - mean2 * scale2).astype(f32).reshape(Cout, 1)

    # (Cmid, Cin, 1, KH, KW) -> (Cmid, KH*KW*Cin); column = (dy*KW+dx)*Cin + ci
    ws = w_spatial[:, :, 0].astype(f32) * scale1[:, None, None, None]
    ws = jnp.transpose(ws, (0, 2, 3, 1)).reshape(Cmid, Kc).astype(bf16)
    # (Cout, Cmid, KT, 1, 1) -> (KT, Cout, Cmid) per-tap temporal weights
    wt = w_temporal[:, :, :, 0, 0].astype(f32) * scale2[:, None, None]
    wt = jnp.transpose(wt, (2, 0, 1)).astype(bf16)

    # ---- host-side im2col: (N, Kc, T*Jp) bf16, lane-dense per frame ----
    xr = jnp.transpose(x, (0, 2, 1, 3, 4))                       # (N, T, Cin, H, W)
    xr = jnp.pad(xr, ((0, 0), (0, 0), (0, 0), (p, p), (p, p)))   # (N, T, Cin, Hp, Wp)
    taps = [xr[:, :, :, dy:dy + Ho, dx:dx + Wo]
            for dy in range(KH) for dx in range(KW)]
    patches = jnp.stack(taps, axis=2)                            # (N,T,KH*KW,Cin,Ho,Wo)
    patches = patches.reshape(N, T, Kc, J)
    patches = jnp.pad(patches, ((0, 0), (0, 0), (0, 0), (0, Jp - J)))
    patches = jnp.transpose(patches, (0, 2, 1, 3)).reshape(N, Kc, T * Jp)
    patches = patches.astype(bf16)

    def kernel(x_ref, ws_ref, wt_ref, b1_ref, b2_ref, o_ref, mid_ref):
        # zero the temporal-halo frames of the bf16 intermediate (lane-aligned slabs)
        if p > 0:
            halo = jnp.zeros((Cmid, p * Jp), bf16)
            mid_ref[:, 0:p * Jp] = halo
            mid_ref[:, (T + p) * Jp:(T + 2 * p) * Jp] = halo

        # ---- spatial (1,k,k) conv + BN1 + ReLU: ONE dot spanning all T frames ----
        acc = jnp.dot(ws_ref[...], x_ref[0],
                      preferred_element_type=f32)                # (Cmid, T*Jp)
        mid_ref[:, p * Jp:(T + p) * Jp] = jnp.maximum(
            acc + b1_ref[...], 0.0).astype(bf16)

        # ---- temporal (k,1,1) conv + BN2 + ReLU: KT accumulated dots, all frames ----
        acc2 = jnp.dot(wt_ref[0], mid_ref[:, 0:To * Jp],
                       preferred_element_type=f32)               # (Cout, To*Jp)
        for dt in range(1, KT):
            acc2 = acc2 + jnp.dot(wt_ref[dt],
                                  mid_ref[:, dt * Jp:dt * Jp + To * Jp],
                                  preferred_element_type=f32)
        o_ref[0] = jnp.maximum(acc2 + b2_ref[...], 0.0)

    out = pl.pallas_call(
        kernel,
        out_shape=jax.ShapeDtypeStruct((N, Cout, To * Jp), f32),
        grid_spec=pltpu.PrefetchScalarGridSpec(
            num_scalar_prefetch=0,
            grid=(N,),
            in_specs=[
                pl.BlockSpec((1, Kc, T * Jp), lambda n: (n, 0, 0)),
                pl.BlockSpec((Cmid, Kc), lambda n: (0, 0)),
                pl.BlockSpec((KT, Cout, Cmid), lambda n: (0, 0, 0)),
                pl.BlockSpec((Cmid, 1), lambda n: (0, 0)),
                pl.BlockSpec((Cout, 1), lambda n: (0, 0)),
            ],
            out_specs=pl.BlockSpec((1, Cout, To * Jp), lambda n: (n, 0, 0)),
            scratch_shapes=[pltpu.VMEM((Cmid, Tp * Jp), bf16)],
        ),
        compiler_params=pltpu.CompilerParams(
            dimension_semantics=("parallel",)),   # shard samples across TensorCores
    )(patches, ws, wt, shift1, shift2)

    # drop the lane padding and return NCDHW
    out = out.reshape(N, Cout, To, Jp)[..., :J].reshape(N, Cout, To, Ho, Wo)
    return out


def reference(x, w_spatial, w_temporal, gamma1, beta1, mean1, var1,
              gamma2, beta2, mean2, var2, padding=1, eps=1e-5):
    p = padding
    dn = ('NCDHW', 'OIDHW', 'NCDHW')
    s1 = gamma1 / jnp.sqrt(var1 + eps)
    b1 = beta1 - mean1 * s1
    s2 = gamma2 / jnp.sqrt(var2 + eps)
    b2 = beta2 - mean2 * s2
    y = lax.conv_general_dilated(x, w_spatial, (1, 1, 1),
                                 ((0, 0), (p, p), (p, p)), dimension_numbers=dn)
    y = y * s1[None, :, None, None, None] + b1[None, :, None, None, None]
    y = jnp.maximum(y, 0.0)
    y = lax.conv_general_dilated(y, w_temporal, (1, 1, 1),
                                 ((p, p), (0, 0), (0, 0)), dimension_numbers=dn)
    y = y * s2[None, :, None, None, None] + b2[None, :, None, None, None]
    return jnp.maximum(y, 0.0)


if __name__ == "__main__":
    # Small shapes consistent with the module (NCDHW).
    N, Cin, T, H, W = 2, 4, 8, 16, 16
    Cout = 8
    k, pad = 3, 1
    # intermed_channels per the module formula (first_conv=False) -> 14
    Cmid = int(math.floor(k * k * k * Cin * Cout / (k * k * Cin + k * Cout)))
    eps = 1e-5

    key = jax.random.PRNGKey(0)
    ks = jax.random.split(key, 10)

    x = jax.random.normal(ks[0], (N, Cin, T, H, W), jnp.float32)

    # Conv weights (bias=False, the module's default).
    w_spatial = jax.random.normal(ks[1], (Cmid, Cin, 1, k, k), jnp.float32) * 0.1
    w_temporal = jax.random.normal(ks[2], (Cout, Cmid, k, 1, 1), jnp.float32) * 0.1

    # BatchNorm (eval mode) parameters.
    gamma1 = jax.random.uniform(ks[3], (Cmid,), jnp.float32, 0.5, 1.5)
    beta1 = jax.random.normal(ks[4], (Cmid,), jnp.float32) * 0.1
    mean1 = jax.random.normal(ks[5], (Cmid,), jnp.float32) * 0.1
    var1 = jax.random.uniform(ks[6], (Cmid,), jnp.float32, 0.5, 1.5)
    gamma2 = jax.random.uniform(ks[7], (Cout,), jnp.float32, 0.5, 1.5)
    beta2 = jax.random.normal(ks[8], (Cout,), jnp.float32) * 0.1
    mean2 = jax.random.normal(ks[9], (Cout,), jnp.float32) * 0.1
    var2 = jnp.ones((Cout,), jnp.float32)

    out = spatio_temporal_conv(x, w_spatial, w_temporal,
                               gamma1, beta1, mean1, var1,
                               gamma2, beta2, mean2, var2,
                               kernel_size=k, padding=pad, eps=eps)
    out = jax.block_until_ready(out)

    ref = reference(x, w_spatial, w_temporal, gamma1, beta1, mean1, var1,
                    gamma2, beta2, mean2, var2, padding=pad, eps=eps)
    ref = jax.block_until_ready(ref)

    assert out.shape == (N, Cout, T, H, W), out.shape
    # bf16 MXU operands (f32 accumulation) -> relaxed tolerance vs the f32 reference.
    assert jnp.allclose(out, ref, rtol=2e-2, atol=4e-2), (
        float(jnp.max(jnp.abs(out - ref))))
    print("KERNEL_OK")
</pallas_src>

<mosaic_0001>
module attributes {stable_mosaic.version = 11 : i64} {
  func.func @kernel(%arg0: i32, %arg1: memref<1x36x2048xbf16, #tpu.memory_space<vmem>>, %arg2: memref<14x36xbf16, #tpu.memory_space<vmem>>, %arg3: memref<3x8x14xbf16, #tpu.memory_space<vmem>>, %arg4: memref<14x1xf32, #tpu.memory_space<vmem>>, %arg5: memref<8x1xf32, #tpu.memory_space<vmem>>, %arg6: memref<1x8x2048xf32, #tpu.memory_space<vmem>>, %arg7: memref<14x2560xbf16, #tpu.memory_space<vmem>>) attributes {dimension_semantics = [#tpu.dimension_semantics<parallel>], iteration_bounds = array<i64: 2>, scalar_prefetch = 0 : i64, scratch_operands = 1 : i64, tpu.core_type = #tpu.core_type<tc>, window_params = [{transform_indices = @transform_0, window_bounds = array<i64: 1, 36, 2048>}, {pipeline_mode = #tpu.pipeline_mode<synchronous>, transform_indices = @transform_1, window_bounds = array<i64: 14, 36>}, {pipeline_mode = #tpu.pipeline_mode<synchronous>, transform_indices = @transform_2, window_bounds = array<i64: 3, 8, 14>}, {pipeline_mode = #tpu.pipeline_mode<synchronous>, transform_indices = @transform_3, window_bounds = array<i64: 14, 1>}, {pipeline_mode = #tpu.pipeline_mode<synchronous>, transform_indices = @transform_4, window_bounds = array<i64: 8, 1>}, {transform_indices = @transform_5, window_bounds = array<i64: 1, 8, 2048>}]} {
    %cst = arith.constant 0.000000e+00 : bf16
    %0 = vector.broadcast %cst : bf16 to vector<14x256xbf16>
    %c0 = arith.constant 0 : index
    %c0_0 = arith.constant 0 : index
    %1 = vector.load %arg7[%c0, %c0_0] : memref<14x2560xbf16, #tpu.memory_space<vmem>>, vector<14x256xbf16>
    tpu.vector_store %arg7[%c0, %c0_0], %0 {strides = array<i32>} : memref<14x2560xbf16, #tpu.memory_space<vmem>>, vector<14x256xbf16>,
    %c0_1 = arith.constant 0 : index
    %c2304 = arith.constant 2304 : index
    %2 = vector.load %arg7[%c0_1, %c2304] : memref<14x2560xbf16, #tpu.memory_space<vmem>>, vector<14x256xbf16>
    tpu.vector_store %arg7[%c0_1, %c2304], %0 {strides = array<i32>} : memref<14x2560xbf16, #tpu.memory_space<vmem>>, vector<14x256xbf16>,
    %c0_2 = arith.constant 0 : index
    %c0_3 = arith.constant 0 : index
    %3 = vector.load %arg2[%c0_2, %c0_3] : memref<14x36xbf16, #tpu.memory_space<vmem>>, vector<14x36xbf16>
    %c0_4 = arith.constant 0 : index
    %c0_5 = arith.constant 0 : index
    %c0_6 = arith.constant 0 : index
    %4 = vector.load %arg1[%c0_4, %c0_5, %c0_6] : memref<1x36x2048xbf16, #tpu.memory_space<vmem>>, vector<1x36x2048xbf16>
    %5 = vector.shape_cast %4 : vector<1x36x2048xbf16> to vector<36x2048xbf16>
    %cst_7 = arith.constant dense<0.000000e+00> : vector<14x2048xf32>
    %6 = tpu.matmul %3, %5, %cst_7 {dimension_numbers = #tpu.dot_dimension_numbers<[1], [0], [0], [1], [0, 0, 1, 1], [], []>} : vector<14x36xbf16>, vector<36x2048xbf16>, vector<14x2048xf32> -> vector<14x2048xf32>
    %c0_8 = arith.constant 0 : index
    %c0_9 = arith.constant 0 : index
    %7 = vector.load %arg4[%c0_8, %c0_9] : memref<14x1xf32, #tpu.memory_space<vmem>>, vector<14x1xf32>
    %8 = vector.broadcast %7 : vector<14x1xf32> to vector<14x2048xf32>
    %9 = arith.addf %6, %8 : vector<14x2048xf32>
    %cst_10 = arith.constant 0.000000e+00 : f32
    %10 = vector.broadcast %cst_10 : f32 to vector<14x2048xf32>
    %11 = arith.maximumf %9, %10 : vector<14x2048xf32>
    %12 = arith.truncf %11 : vector<14x2048xf32> to vector<14x2048xbf16>
    %c0_11 = arith.constant 0 : index
    %c256 = arith.constant 256 : index
    %13 = vector.load %arg7[%c0_11, %c256] : memref<14x2560xbf16, #tpu.memory_space<vmem>>, vector<14x2048xbf16>
    tpu.vector_store %arg7[%c0_11, %c256], %12 {strides = array<i32>} : memref<14x2560xbf16, #tpu.memory_space<vmem>>, vector<14x2048xbf16>,
    %c0_12 = arith.constant 0 : index
    %c0_13 = arith.constant 0 : index
    %c0_14 = arith.constant 0 : index
    %14 = vector.load %arg3[%c0_12, %c0_13, %c0_14] : memref<3x8x14xbf16, #tpu.memory_space<vmem>>, vector<1x8x14xbf16>
    %15 = vector.shape_cast %14 : vector<1x8x14xbf16> to vector<8x14xbf16>
    %c0_15 = arith.constant 0 : index
    %c0_16 = arith.constant 0 : index
    %16 = vector.load %arg7[%c0_15, %c0_16] : memref<14x2560xbf16, #tpu.memory_space<vmem>>, vector<14x2048xbf16>
    %cst_17 = arith.constant dense<0.000000e+00> : vector<8x2048xf32>
    %17 = tpu.matmul %15, %16, %cst_17 {dimension_numbers = #tpu.dot_dimension_numbers<[1], [0], [0], [1], [0, 0, 1, 1], [], []>} : vector<8x14xbf16>, vector<14x2048xbf16>, vector<8x2048xf32> -> vector<8x2048xf32>
    %c1 = arith.constant 1 : index
    %c0_18 = arith.constant 0 : index
    %c0_19 = arith.constant 0 : index
    %18 = vector.load %arg3[%c1, %c0_18, %c0_19] : memref<3x8x14xbf16, #tpu.memory_space<vmem>>, vector<1x8x14xbf16>
    %19 = vector.shape_cast %18 : vector<1x8x14xbf16> to vector<8x14xbf16>
    %c0_20 = arith.constant 0 : index
    %c256_21 = arith.constant 256 : index
    %20 = vector.load %arg7[%c0_20, %c256_21] : memref<14x2560xbf16, #tpu.memory_space<vmem>>, vector<14x2048xbf16>
    %cst_22 = arith.constant dense<0.000000e+00> : vector<8x2048xf32>
    %21 = tpu.matmul %19, %20, %cst_22 {dimension_numbers = #tpu.dot_dimension_numbers<[1], [0], [0], [1], [0, 0, 1, 1], [], []>} : vector<8x14xbf16>, vector<14x2048xbf16>, vector<8x2048xf32> -> vector<8x2048xf32>
    %22 = arith.addf %17, %21 : vector<8x2048xf32>
    %c2 = arith.constant 2 : index
    %c0_23 = arith.constant 0 : index
    %c0_24 = arith.constant 0 : index
    %23 = vector.load %arg3[%c2, %c0_23, %c0_24] : memref<3x8x14xbf16, #tpu.memory_space<vmem>>, vector<1x8x14xbf16>
    %24 = vector.shape_cast %23 : vector<1x8x14xbf16> to vector<8x14xbf16>
    %c0_25 = arith.constant 0 : index
    %c512 = arith.constant 512 : index
    %25 = vector.load %arg7[%c0_25, %c512] : memref<14x2560xbf16, #tpu.memory_space<vmem>>, vector<14x2048xbf16>
    %cst_26 = arith.constant dense<0.000000e+00> : vector<8x2048xf32>
    %26 = tpu.matmul %24, %25, %cst_26 {dimension_numbers = #tpu.dot_dimension_numbers<[1], [0], [0], [1], [0, 0, 1, 1], [], []>} : vector<8x14xbf16>, vector<14x2048xbf16>, vector<8x2048xf32> -> vector<8x2048xf32>
    %27 = arith.addf %22, %26 : vector<8x2048xf32>
    %c0_27 = arith.constant 0 : index
    %c0_28 = arith.constant 0 : index
    %28 = vector.load %arg5[%c0_27, %c0_28] : memref<8x1xf32, #tpu.memory_space<vmem>>, vector<8x1xf32>
    %29 = vector.broadcast %28 : vector<8x1xf32> to vector<8x2048xf32>
    %30 = arith.addf %27, %29 : vector<8x2048xf32>
    %cst_29 = arith.constant 0.000000e+00 : f32
    %31 = vector.broadcast %cst_29 : f32 to vector<8x2048xf32>
    %32 = arith.maximumf %30, %31 : vector<8x2048xf32>
    %c0_30 = arith.constant 0 : index
    %c0_31 = arith.constant 0 : index
    %c0_32 = arith.constant 0 : index
    %33 = vector.load %arg6[%c0_30, %c0_31, %c0_32] : memref<1x8x2048xf32, #tpu.memory_space<vmem>>, vector<1x8x2048xf32>
    %34 = vector.shape_cast %33 : vector<1x8x2048xf32> to vector<8x2048xf32>
    %35 = vector.shape_cast %32 : vector<8x2048xf32> to vector<1x8x2048xf32>
    tpu.vector_store %arg6[%c0_30, %c0_31, %c0_32], %35 {strides = array<i32>} : memref<1x8x2048xf32, #tpu.memory_space<vmem>>, vector<1x8x2048xf32>,
    return
  }
  func.func @transform_0(%arg0: i32) -> (i32, i32, i32) {
    %c0_i32 = arith.constant 0 : i32
    %c0_i32_0 = arith.constant 0 : i32
    %c0_i32_1 = arith.constant 0 : i32
    return %arg0, %c0_i32, %c0_i32_0 : i32, i32, i32
  }
  func.func @transform_1(%arg0: i32) -> (i32, i32) {
    %c0_i32 = arith.constant 0 : i32
    %c0_i32_0 = arith.constant 0 : i32
    %c0_i32_1 = arith.constant 0 : i32
    return %c0_i32, %c0_i32_0 : i32, i32
  }
  func.func @transform_2(%arg0: i32) -> (i32, i32, i32) {
    %c0_i32 = arith.constant 0 : i32
    %c0_i32_0 = arith.constant 0 : i32
    %c0_i32_1 = arith.constant 0 : i32
    %c0_i32_2 = arith.constant 0 : i32
    return %c0_i32, %c0_i32_0, %c0_i32_1 : i32, i32, i32
  }
  func.func @transform_3(%arg0: i32) -> (i32, i32) {
    %c0_i32 = arith.constant 0 : i32
    %c0_i32_0 = arith.constant 0 : i32
    %c0_i32_1 = arith.constant 0 : i32
    return %c0_i32, %c0_i32_0 : i32, i32
  }
  func.func @transform_4(%arg0: i32) -> (i32, i32) {
    %c0_i32 = arith.constant 0 : i32
    %c0_i32_0 = arith.constant 0 : i32
    %c0_i32_1 = arith.constant 0 : i32
    return %c0_i32, %c0_i32_0 : i32, i32
  }
  func.func @transform_5(%arg0: i32) -> (i32, i32, i32) {
    %c0_i32 = arith.constant 0 : i32
    %c0_i32_0 = arith.constant 0 : i32
    %c0_i32_1 = arith.constant 0 : i32
    return %arg0, %c0_i32, %c0_i32_0 : i32, i32, i32
  }
}

</mosaic_0001>

<llo_original>
// kernel: tpu_custom_call.1
$region0: #{tpu_custom_call.1}
  #allocation0 [shape = 'u32[]', space=smem, size = 0x4, offset = 0x4, fixed_abs, tag = 'smem constant byte address 0x4 - core index']
  #allocation1 [shape = 'u32[72,128]{1,0:T(1,128)}', space=vmem, size = 0x9000, scoped, tag = 'internal scratch']
  #allocation2 [shape = 'bf16[14,2560]{1,0:T(8,128)(2,1)}', space=vmem, size = 0x14000, scoped, tag = 'scratch operand']
  %s0 = inlined_call_operand.vmem [shape: bf16[2,36,2048], index: 0, kind: input, shape index: {}]
  %s1 = inlined_call_operand.vmem [shape: bf16[14,36], index: 1, kind: input, shape index: {}]
  %s2 = inlined_call_operand.vmem [shape: bf16[3,8,14], index: 2, kind: input, shape index: {}]
  %s3 = inlined_call_operand.vmem [shape: f32[14,1], index: 3, kind: input, shape index: {}]
  %s4 = inlined_call_operand.vmem [shape: f32[8,1], index: 4, kind: input, shape index: {}]
  %s5 = inlined_call_operand.hbm [shape: f32[2,8,2048], index: 5, kind: output, shape index: {}]
  %s6 = sld [smem:[#allocation0]]
  $region53: #{tpu_custom_call.1} parent=0
    _
  %s8 = ssub.s32 1, %s6
  %s9 = scalar_select 0, %s8, %s6
  $region1: #{tpu_custom_call.1} parent=0
    #allocation3 [shape = 'u8[131072]{0}', space=vmem, size = 0x20000, scoped, tag = 'output window, operand 0']
    #allocation4 [shape = 's32[2]{0}', space=sflag, size = 0x8, scoped, tag = 'scoped memory for tpu_custom_call.1']
    %10 = vsyncpa [#allocation4], 0
    %s11 = scalar_lea.sflag [#allocation4], 1
    %12 = vsyncpa %s11, 0
    loop: start=0, step=1, limit=4
    $region2: #{tpu_custom_call.1} parent=1 // loop_pre_header
      _
    $region3: #{tpu_custom_call.1} parent=1 // loop_header
      %s14 = sphi 0, %s18
      %p15 = scmp.ge.s32.totalorder %s14, 4
      %s24 = sphi 0, %s26
      %s27 = sphi 0, %s24
      %s28 = sphi 0, %s27
      %s44 = sphi 0, %s28
      %s48 = sphi 0, %s48
      %s50 = sphi 0, %s48
      %s51 = sphi 0, %s50
      %s65 = sphi 0, %s51
      %s69 = sphi 0, %s69
      %s71 = sphi 0, %s69
      %s72 = sphi 0, %s71
      %s86 = sphi 0, %s72
      %s90 = sphi 0, %s90
      %s92 = sphi 0, %s90
      %s93 = sphi 0, %s92
      %s107 = sphi 0, %s93
      %s111 = sphi 0, %s111
      %s113 = sphi 0, %s111
      %s114 = sphi 0, %s113
      %s128 = sphi 0, %s114
      %s134 = sphi 0, %s136
      %s137 = sphi 0, %s134
      %s138 = sphi 0, %s137
      %s154 = sphi 0, %s138
    $region4: #{tpu_custom_call.1} parent=1 // loop_header_branch
      %17 = sbr.rel (%p15) target = $region8
    $region5: #{tpu_custom_call.1} parent=1 // loop_body
      %s19 = ssub.s32 %s14, 1
      %s20 = ssub.s32 %s14, 2
      %s21 = sadd.s32 %s14, 1
      %s22 = ssub.s32 %s14, %s21
      %p23 = scmp.eq.s32.totalorder %s22, 0
      %s25 = sadd.s32 %s24, 1
      %s26 = scalar_select %p23, %s24, %s25
      %p29 = pneg %p23
      %p30 = scmp.eq.s32.totalorder %s14, 1
      %p31 = por %p29, %p30
      %p32 = scmp.ne.s32.totalorder %s24, %s27
      %p33 = scmp.eq.s32.totalorder %s14, 0
      %p34 = por %p32, %p33
      %p35 = scmp.ne.s32.totalorder %s24, %s27
      %p36 = scmp.eq.s32.totalorder %s19, 1
      %p37 = por %p35, %p36
      %p38 = scmp.ne.s32.totalorder %s27, %s28
      %p39 = scmp.eq.s32.totalorder %s19, 0
      %p40 = por %p38, %p39
      %p41 = scmp.ne.s32.totalorder %s27, %s28
      %p42 = scmp.eq.s32.totalorder %s20, 1
      %p43 = por %p41, %p42
      %p45 = scmp.ne.s32.totalorder %s28, %s44
      %p46 = scmp.eq.s32.totalorder %s20, 0
      %p47 = por %p45, %p46
      %s49 = sadd.s32 %s48, 1
      %p52 = scmp.eq.s32.totalorder %s14, 1
      %p53 = scmp.ne.s32.totalorder %s48, %s50
      %p54 = scmp.eq.s32.totalorder %s14, 0
      %p55 = por %p53, %p54
      %p56 = scmp.ne.s32.totalorder %s48, %s50
      %p57 = scmp.eq.s32.totalorder %s19, 1
      %p58 = por %p56, %p57
      %p59 = scmp.ne.s32.totalorder %s50, %s51
      %p60 = scmp.eq.s32.totalorder %s19, 0
      %p61 = por %p59, %p60
      %p62 = scmp.ne.s32.totalorder %s50, %s51
      %p63 = scmp.eq.s32.totalorder %s20, 1
      %p64 = por %p62, %p63
      %p66 = scmp.ne.s32.totalorder %s51, %s65
      %p67 = scmp.eq.s32.totalorder %s20, 0
      %p68 = por %p66, %p67
      %s70 = sadd.s32 %s69, 1
      %p73 = scmp.eq.s32.totalorder %s14, 1
      %p74 = scmp.ne.s32.totalorder %s69, %s71
      %p75 = scmp.eq.s32.totalorder %s14, 0
      %p76 = por %p74, %p75
      %p77 = scmp.ne.s32.totalorder %s69, %s71
      %p78 = scmp.eq.s32.totalorder %s19, 1
      %p79 = por %p77, %p78
      %p80 = scmp.ne.s32.totalorder %s71, %s72
      %p81 = scmp.eq.s32.totalorder %s19, 0
      %p82 = por %p80, %p81
      %p83 = scmp.ne.s32.totalorder %s71, %s72
      %p84 = scmp.eq.s32.totalorder %s20, 1
      %p85 = por %p83, %p84
      %p87 = scmp.ne.s32.totalorder %s72, %s86
      %p88 = scmp.eq.s32.totalorder %s20, 0
      %p89 = por %p87, %p88
      %s91 = sadd.s32 %s90, 1
      %p94 = scmp.eq.s32.totalorder %s14, 1
      %p95 = scmp.ne.s32.totalorder %s90, %s92
      %p96 = scmp.eq.s32.totalorder %s14, 0
      %p97 = por %p95, %p96
      %p98 = scmp.ne.s32.totalorder %s90, %s92
      %p99 = scmp.eq.s32.totalorder %s19, 1
      %p100 = por %p98, %p99
      %p101 = scmp.ne.s32.totalorder %s92, %s93
      %p102 = scmp.eq.s32.totalorder %s19, 0
      %p103 = por %p101, %p102
      %p104 = scmp.ne.s32.totalorder %s92, %s93
      %p105 = scmp.eq.s32.totalorder %s20, 1
      %p106 = por %p104, %p105
      %p108 = scmp.ne.s32.totalorder %s93, %s107
      %p109 = scmp.eq.s32.totalorder %s20, 0
      %p110 = por %p108, %p109
      %s112 = sadd.s32 %s111, 1
      %p115 = scmp.eq.s32.totalorder %s14, 1
      %p116 = scmp.ne.s32.totalorder %s111, %s113
      %p117 = scmp.eq.s32.totalorder %s14, 0
      %p118 = por %p116, %p117
      %p119 = scmp.ne.s32.totalorder %s111, %s113
      %p120 = scmp.eq.s32.totalorder %s19, 1
      %p121 = por %p119, %p120
      %p122 = scmp.ne.s32.totalorder %s113, %s114
      %p123 = scmp.eq.s32.totalorder %s19, 0
      %p124 = por %p122, %p123
      %p125 = scmp.ne.s32.totalorder %s113, %s114
      %p126 = scmp.eq.s32.totalorder %s20, 1
      %p127 = por %p125, %p126
      %p129 = scmp.ne.s32.totalorder %s114, %s128
      %p130 = scmp.eq.s32.totalorder %s20, 0
      %p131 = por %p129, %p130
      %s132 = ssub.s32 %s14, %s21
      %p133 = scmp.eq.s32.totalorder %s132, 0
      %s135 = sadd.s32 %s134, 1
      %s136 = scalar_select %p133, %s134, %s135
      %p139 = pneg %p133
      %p140 = scmp.eq.s32.totalorder %s14, 1
      %p141 = por %p139, %p140
      %p142 = scmp.ne.s32.totalorder %s134, %s137
      %p143 = scmp.eq.s32.totalorder %s14, 0
      %p144 = por %p142, %p143
      %p145 = scmp.ne.s32.totalorder %s134, %s137
      %p146 = scmp.eq.s32.totalorder %s19, 1
      %p147 = por %p145, %p146
      %p148 = scmp.ne.s32.totalorder %s137, %s138
      %p149 = scmp.eq.s32.totalorder %s19, 0
      %p150 = por %p148, %p149
      %p151 = scmp.ne.s32.totalorder %s137, %s138
      %p152 = scmp.eq.s32.totalorder %s20, 1
      %p153 = por %p151, %p152
      %p155 = scmp.ne.s32.totalorder %s138, %s154
      %p156 = scmp.eq.s32.totalorder %s20, 0
      %p157 = por %p155, %p156
      %p158 = scmp.le.s32.totalorder 1, %s14
      %p159 = scmp.lt.s32.totalorder %s14, 3
      %p160 = pnand %p158, %p159
      %p161 = pneg %p160
      // Predicated region
      $region9: #{tpu_custom_call.1} parent=5 // pred_check
        _
      $region10: #{tpu_custom_call.1} parent=5 // pred_check_branch
        %163 = sbr.rel (%p160) target = $region12
      $region11: #{tpu_custom_call.1} parent=5 // pred_region
        %s164 = ssub.s32 %s14, 1
        // Predicated region
        $region13: #{tpu_custom_call.1} parent=11 // pred_check
          %p165 = pneg %p61
        $region14: #{tpu_custom_call.1} parent=11 // pred_check_branch
          %167 = sbr.rel (%p165) target = $region16
        $region15: #{tpu_custom_call.1} parent=11 // pred_region
          _
        $region16: #{tpu_custom_call.1} parent=11 // pred_fallthru
          _
        // Predicated region
        $region17: #{tpu_custom_call.1} parent=11 // pred_check
          %p168 = pneg %p82
        $region18: #{tpu_custom_call.1} parent=11 // pred_check_branch
          %170 = sbr.rel (%p168) target = $region20
        $region19: #{tpu_custom_call.1} parent=11 // pred_region
          _
        $region20: #{tpu_custom_call.1} parent=11 // pred_fallthru
          _
        // Predicated region
        $region21: #{tpu_custom_call.1} parent=11 // pred_check
          %p171 = pneg %p103
        $region22: #{tpu_custom_call.1} parent=11 // pred_check_branch
          %173 = sbr.rel (%p171) target = $region24
        $region23: #{tpu_custom_call.1} parent=11 // pred_region
          _
        $region24: #{tpu_custom_call.1} parent=11 // pred_fallthru
          _
        // Predicated region
        $region25: #{tpu_custom_call.1} parent=11 // pred_check
          %p174 = pneg %p124
        $region26: #{tpu_custom_call.1} parent=11 // pred_check_branch
          %176 = sbr.rel (%p174) target = $region28
        $region27: #{tpu_custom_call.1} parent=11 // pred_region
          _
        $region28: #{tpu_custom_call.1} parent=11 // pred_fallthru
          _
      $region12: #{tpu_custom_call.1} parent=5 // pred_fallthru
        _
      %p177 = scmp.lt.s32.totalorder %s14, 2
      // Predicated region
      $region29: #{tpu_custom_call.1} parent=5 // pred_check
        %p178 = pneg %p177
      $region30: #{tpu_custom_call.1} parent=5 // pred_check_branch
        %180 = sbr.rel (%p178) target = $region32
      $region31: #{tpu_custom_call.1} parent=5 // pred_region
        // Predicated region
        $region33: #{tpu_custom_call.1} parent=31 // pred_check
          %p181 = pneg %p34
        $region34: #{tpu_custom_call.1} parent=31 // pred_check_branch
          %183 = sbr.rel (%p181) target = $region36
        $region35: #{tpu_custom_call.1} parent=31 // pred_region
          %p184 = scmp.lt.s32.totalorder %s14, 1
          %s185 = scalar_select %p184, %s14, 1
          %s186 = smul.addr %s185, 80
          %s187 = smul.addr %s186, 4
          %s188 = scalar_lea.vmem %s0, %s187
        $region36: #{tpu_custom_call.1} parent=31 // pred_fallthru
          _
      $region32: #{tpu_custom_call.1} parent=5 // pred_fallthru
        _
      %p189 = scmp.le.s32.totalorder 1, %s14
      %p190 = scmp.lt.s32.totalorder %s14, 3
      %p191 = pnand %p189, %p190
      %p192 = pneg %p191
      // Predicated region
      $region37: #{tpu_custom_call.1} parent=5 // pred_check
        _
      $region38: #{tpu_custom_call.1} parent=5 // pred_check_branch
        %194 = sbr.rel (%p191) target = $region40
      $region39: #{tpu_custom_call.1} parent=5 // pred_region
        %s195 = ssub.s32 %s14, 1
        %p196 = scmp.lt.s32.totalorder %s19, 1
        %s197 = scalar_select %p196, %s19, 1
        %s198 = smul.addr %s197, 80
        %s199 = smul.addr %s198, 4
        %s200 = scalar_lea.vmem %s0, %s199
        %p201 = pneg %p40
        %p202 = pneg %p37
        %p203 = pneg %p61
        %p204 = pneg %p58
        %p205 = pneg %p82
        %p206 = pneg %p79
        %p207 = pneg %p103
        %p208 = pneg %p100
        %p209 = pneg %p124
        %p210 = pneg %p121
        %p211 = pneg %p150
        %p212 = pneg %p147
        %s213 = sand.u32 %s137, 1
        %s214 = scalar_lea.sflag [#allocation4], %s213
        %s215 = sand.u32 %s137, 1
        %s216 = smul.addr %s215, 128
        %s217 = scalar_lea.vmem [#allocation3], %s216
        %p218 = scmp.lt.s32.totalorder %s19, 1
        %s219 = scalar_select %p218, %s19, 1
        %s220 = smul.addr %s219, 80
        %s221 = smul.addr %s220, 4
        %s222 = scalar_lea.vmem %s0, %s221
        %224 = vst [vmem:[#allocation2] sm:$0xff] 0
        %225 = vst [vmem:[#allocation2 + $0x50] sm:$0x77] 0
        %226 = vst [vmem:[#allocation2 + $0x48] sm:$0xff] 0
        %227 = vst [vmem:[#allocation2 + $0x98] sm:$0x77] 0
        %v228 = vld [vmem:[%s1] sm:$0xf]
        %v229 = vld [vmem:[%s1 + $0x4] sm:$0x7]
        %v230 = vld [vmem:[%s222] sm:$0xff]
        %v231 = vld [vmem:[%s222 + $0x8] sm:$0xff]
        %v232 = vld [vmem:[%s222 + $0x10] sm:$0xff]
        %v233 = vld [vmem:[%s222 + $0x18] sm:$0xff]
        %v234 = vld [vmem:[%s222 + $0x20] sm:$0xff]
        %v235 = vld [vmem:[%s222 + $0x28] sm:$0xff]
        %v236 = vld [vmem:[%s222 + $0x30] sm:$0xff]
        %v237 = vld [vmem:[%s222 + $0x38] sm:$0xff]
        %v238 = vld [vmem:[%s222 + $0x40] sm:$0xff]
        %v239 = vld [vmem:[%s222 + $0x48] sm:$0xff]
        %v240 = vld [vmem:[%s222 + $0x50] sm:$0xff]
        %v241 = vld [vmem:[%s222 + $0x58] sm:$0xff]
        %v242 = vld [vmem:[%s222 + $0x60] sm:$0xff]
        %v243 = vld [vmem:[%s222 + $0x68] sm:$0xff]
        %v244 = vld [vmem:[%s222 + $0x70] sm:$0xff]
        %v245 = vld [vmem:[%s222 + $0x78] sm:$0xff]
        %v246 = vld [vmem:[%s222 + $0x80] sm:$0xff]
        %v247 = vld [vmem:[%s222 + $0x88] sm:$0xff]
        %v248 = vld [vmem:[%s222 + $0x90] sm:$0xff]
        %v249 = vld [vmem:[%s222 + $0x98] sm:$0xff]
        %v250 = vld [vmem:[%s222 + $0xa0] sm:$0xff]
        %v251 = vld [vmem:[%s222 + $0xa8] sm:$0xff]
        %v252 = vld [vmem:[%s222 + $0xb0] sm:$0xff]
        %v253 = vld [vmem:[%s222 + $0xb8] sm:$0xff]
        %v254 = vld [vmem:[%s222 + $0xc0] sm:$0xff]
        %v255 = vld [vmem:[%s222 + $0xc8] sm:$0xff]
        %v256 = vld [vmem:[%s222 + $0xd0] sm:$0xff]
        %v257 = vld [vmem:[%s222 + $0xd8] sm:$0xff]
        %v258 = vld [vmem:[%s222 + $0xe0] sm:$0xff]
        %v259 = vld [vmem:[%s222 + $0xe8] sm:$0xff]
        %v260 = vld [vmem:[%s222 + $0xf0] sm:$0xff]
        %v261 = vld [vmem:[%s222 + $0xf8] sm:$0xff]
        %v262 = vld [vmem:[%s222 + $0x100] sm:$0x33]
        %v263 = vld [vmem:[%s222 + $0x108] sm:$0x33]
        %v264 = vld [vmem:[%s222 + $0x110] sm:$0x33]
        %v265 = vld [vmem:[%s222 + $0x118] sm:$0x33]
        %v266 = vld [vmem:[%s222 + $0x120] sm:$0x33]
        %v267 = vld [vmem:[%s222 + $0x128] sm:$0x33]
        %v268 = vld [vmem:[%s222 + $0x130] sm:$0x33]
        %v269 = vld [vmem:[%s222 + $0x138] sm:$0x33]
        %v270 = vld [vmem:[%s3] sm:$0xff]
        %v271 = vld [vmem:[%s3 + $0x8] sm:$0x3f]
        %273 = vset.pattern.permute.xlu0 0
        %274 = vperm.xlu0 %273, %v270
        %v275 = vpop.permute.xlu0 %274
        %278 = vset.pattern.permute.xlu0 0
        %279 = vperm.xlu0 %278, %v271
        %v280 = vpop.permute.xlu0 %279
        %v284 = vunpack.c.l.b16 %v228
        %v285 = vunpack.c.l.b16 %v229
        %v286 = vpack.c.b16 %v285, %v284
        %v327 = vunpack.c.l.b16 %v230
        %v328 = vunpack.c.h.b16 %v230
        %v329 = vunpack.c.l.b16 %v231
        %v330 = vunpack.c.h.b16 %v231
        %v331 = vunpack.c.l.b16 %v232
        %v332 = vunpack.c.h.b16 %v232
        %v333 = vunpack.c.l.b16 %v233
        %v334 = vunpack.c.h.b16 %v233
        %v335 = vunpack.c.l.b16 %v234
        %v336 = vunpack.c.h.b16 %v234
        %v337 = vunpack.c.l.b16 %v235
        %v338 = vunpack.c.h.b16 %v235
        %v339 = vunpack.c.l.b16 %v236
        %v340 = vunpack.c.h.b16 %v236
        %v341 = vunpack.c.l.b16 %v237
        %v342 = vunpack.c.h.b16 %v237
        %v343 = vunpack.c.l.b16 %v238
        %v344 = vunpack.c.h.b16 %v238
        %v345 = vunpack.c.l.b16 %v239
        %v346 = vunpack.c.h.b16 %v239
        %v347 = vunpack.c.l.b16 %v240
        %v348 = vunpack.c.h.b16 %v240
        %v349 = vunpack.c.l.b16 %v241
        %v350 = vunpack.c.h.b16 %v241
        %v351 = vunpack.c.l.b16 %v242
        %v352 = vunpack.c.h.b16 %v242
        %v353 = vunpack.c.l.b16 %v243
        %v354 = vunpack.c.h.b16 %v243
        %v355 = vunpack.c.l.b16 %v244
        %v356 = vunpack.c.h.b16 %v244
        %v357 = vunpack.c.l.b16 %v245
        %v358 = vunpack.c.h.b16 %v245
        %v359 = vunpack.c.l.b16 %v246
        %v360 = vunpack.c.h.b16 %v246
        %v361 = vunpack.c.l.b16 %v247
        %v362 = vunpack.c.h.b16 %v247
        %v363 = vunpack.c.l.b16 %v248
        %v364 = vunpack.c.h.b16 %v248
        %v365 = vunpack.c.l.b16 %v249
        %v366 = vunpack.c.h.b16 %v249
        %v367 = vunpack.c.l.b16 %v250
        %v368 = vunpack.c.h.b16 %v250
        %v369 = vunpack.c.l.b16 %v251
        %v370 = vunpack.c.h.b16 %v251
        %v371 = vunpack.c.l.b16 %v252
        %v372 = vunpack.c.h.b16 %v252
        %v373 = vunpack.c.l.b16 %v253
        %v374 = vunpack.c.h.b16 %v253
        %v375 = vunpack.c.l.b16 %v254
        %v376 = vunpack.c.h.b16 %v254
        %v377 = vunpack.c.l.b16 %v255
        %v378 = vunpack.c.h.b16 %v255
        %v379 = vunpack.c.l.b16 %v256
        %v380 = vunpack.c.h.b16 %v256
        %v381 = vunpack.c.l.b16 %v257
        %v382 = vunpack.c.h.b16 %v257
        %v383 = vunpack.c.l.b16 %v258
        %v384 = vunpack.c.h.b16 %v258
        %v385 = vunpack.c.l.b16 %v259
        %v386 = vunpack.c.h.b16 %v259
        %v387 = vunpack.c.l.b16 %v260
        %v388 = vunpack.c.h.b16 %v260
        %v389 = vunpack.c.l.b16 %v261
        %v390 = vunpack.c.h.b16 %v261
        %v391 = vunpack.c.l.b16 %v262
        %v392 = vunpack.c.h.b16 %v262
        %v393 = vunpack.c.l.b16 %v263
        %v394 = vunpack.c.h.b16 %v263
        %v395 = vunpack.c.l.b16 %v264
        %v396 = vunpack.c.h.b16 %v264
        %v397 = vunpack.c.l.b16 %v265
        %v398 = vunpack.c.h.b16 %v265
        %v399 = vunpack.c.l.b16 %v266
        %v400 = vunpack.c.h.b16 %v266
        %v401 = vunpack.c.l.b16 %v267
        %v402 = vunpack.c.h.b16 %v267
        %v403 = vunpack.c.l.b16 %v268
        %v404 = vunpack.c.h.b16 %v268
        %v405 = vunpack.c.l.b16 %v269
        %v406 = vunpack.c.h.b16 %v269
        %v407 = vpack.c.b16 %v343, %v327
        %v408 = vpack.c.b16 %v344, %v328
        %v409 = vpack.c.b16 %v345, %v329
        %v410 = vpack.c.b16 %v346, %v330
        %v411 = vpack.c.b16 %v347, %v331
        %v412 = vpack.c.b16 %v348, %v332
        %v413 = vpack.c.b16 %v349, %v333
        %v414 = vpack.c.b16 %v350, %v334
        %v415 = vpack.c.b16 %v351, %v335
        %v416 = vpack.c.b16 %v352, %v336
        %v417 = vpack.c.b16 %v353, %v337
        %v418 = vpack.c.b16 %v354, %v338
        %v419 = vpack.c.b16 %v355, %v339
        %v420 = vpack.c.b16 %v356, %v340
        %v421 = vpack.c.b16 %v357, %v341
        %v422 = vpack.c.b16 %v358, %v342
        %v423 = vpack.c.b16 %v375, %v359
        %v424 = vpack.c.b16 %v376, %v360
        %v425 = vpack.c.b16 %v377, %v361
        %v426 = vpack.c.b16 %v378, %v362
        %v427 = vpack.c.b16 %v379, %v363
        %v428 = vpack.c.b16 %v380, %v364
        %v429 = vpack.c.b16 %v381, %v365
        %v430 = vpack.c.b16 %v382, %v366
        %v431 = vpack.c.b16 %v383, %v367
        %v432 = vpack.c.b16 %v384, %v368
        %v433 = vpack.c.b16 %v385, %v369
        %v434 = vpack.c.b16 %v386, %v370
        %v435 = vpack.c.b16 %v387, %v371
        %v436 = vpack.c.b16 %v388, %v372
        %v437 = vpack.c.b16 %v389, %v373
        %v438 = vpack.c.b16 %v390, %v374
        %v439 = vpack.c.b16 %v391, %v391
        %v440 = vpack.c.b16 %v392, %v392
        %v441 = vpack.c.b16 %v393, %v393
        %v442 = vpack.c.b16 %v394, %v394
        %v443 = vpack.c.b16 %v395, %v395
        %v444 = vpack.c.b16 %v396, %v396
        %v445 = vpack.c.b16 %v397, %v397
        %v446 = vpack.c.b16 %v398, %v398
        %v447 = vpack.c.b16 %v399, %v399
        %v448 = vpack.c.b16 %v400, %v400
        %v449 = vpack.c.b16 %v401, %v401
        %v450 = vpack.c.b16 %v402, %v402
        %v451 = vpack.c.b16 %v403, %v403
        %v452 = vpack.c.b16 %v404, %v404
        %v453 = vpack.c.b16 %v405, %v405
        %v454 = vpack.c.b16 %v406, %v406
        %vm487 = vcmask 293888
        %v489 = vsel %vm487, %v286, 0
        %vm491 = vcmask 1041408
        %v493 = vsel %vm491, %v439, 0
        %v496 = vsel %vm491, %v440, 0
        %v499 = vsel %vm491, %v441, 0
        %v502 = vsel %vm491, %v442, 0
        %v505 = vsel %vm491, %v443, 0
        %v508 = vsel %vm491, %v444, 0
        %v511 = vsel %vm491, %v445, 0
        %v514 = vsel %vm491, %v446, 0
        %v517 = vsel %vm491, %v447, 0
        %v520 = vsel %vm491, %v448, 0
        %v523 = vsel %vm491, %v449, 0
        %v526 = vsel %vm491, %v450, 0
        %v529 = vsel %vm491, %v451, 0
        %v532 = vsel %vm491, %v452, 0
        %v535 = vsel %vm491, %v453, 0
        %v538 = vsel %vm491, %v454, 0
        %540 = vmatpush.bf16.msra.mxu0 0
        %541 = vmatpush.bf16.msra.mxu0 0
        %542 = vmatpush.bf16.msra.mxu0 0
        %543 = vmatpush.bf16.msra.mxu0 0
        %544 = vmatpush.bf16.msra.mxu0 0
        %545 = vmatpush.bf16.msra.mxu0 %v493
        %546 = vmatpush.bf16.msra.mxu0 %v423
        %547 = vmatpush.bf16.msra.mxu0 %v407
        %548 = vmatmul.bf16.gmra.mxu0 %v489
        %v549 = vpop.f32.mrf.mxu0
        %v550 = vadd.f32 %v275, %v549
        %v551 = vpop.f32.mrf.mxu0
        %v552 = vadd.f32 %v280, %v551
        %553 = vdwg.mxu0
        %554 = vmatpush.bf16.msra.mxu0 0
        %555 = vmatpush.bf16.msra.mxu0 0
        %556 = vmatpush.bf16.msra.mxu0 0
        %557 = vmatpush.bf16.msra.mxu0 0
        %558 = vmatpush.bf16.msra.mxu0 0
        %559 = vmatpush.bf16.msra.mxu0 %v496
        %560 = vmatpush.bf16.msra.mxu0 %v424
        %561 = vmatpush.bf16.msra.mxu0 %v408
        %562 = vmatmul.bf16.gmra.mxu0 %v489
        %v563 = vpop.f32.mrf.mxu0
        %v564 = vadd.f32 %v275, %v563
        %v565 = vpop.f32.mrf.mxu0
        %v566 = vadd.f32 %v280, %v565
        %567 = vdwg.mxu0
        %568 = vmatpush.bf16.msra.mxu0 0
        %569 = vmatpush.bf16.msra.mxu0 0
        %570 = vmatpush.bf16.msra.mxu0 0
        %571 = vmatpush.bf16.msra.mxu0 0
        %572 = vmatpush.bf16.msra.mxu0 0
        %573 = vmatpush.bf16.msra.mxu0 %v499
        %574 = vmatpush.bf16.msra.mxu0 %v425
        %575 = vmatpush.bf16.msra.mxu0 %v409
        %576 = vmatmul.bf16.gmra.mxu0 %v489
        %v577 = vpop.f32.mrf.mxu0
        %v578 = vadd.f32 %v275, %v577
        %v579 = vpop.f32.mrf.mxu0
        %v580 = vadd.f32 %v280, %v579
        %581 = vdwg.mxu0
        %582 = vmatpush.bf16.msra.mxu0 0
        %583 = vmatpush.bf16.msra.mxu0 0
        %584 = vmatpush.bf16.msra.mxu0 0
        %585 = vmatpush.bf16.msra.mxu0 0
        %586 = vmatpush.bf16.msra.mxu0 0
        %587 = vmatpush.bf16.msra.mxu0 %v502
        %588 = vmatpush.bf16.msra.mxu0 %v426
        %589 = vmatpush.bf16.msra.mxu0 %v410
        %590 = vmatmul.bf16.gmra.mxu0 %v489
        %v591 = vpop.f32.mrf.mxu0
        %v592 = vadd.f32 %v275, %v591
        %v593 = vpop.f32.mrf.mxu0
        %v594 = vadd.f32 %v280, %v593
        %595 = vdwg.mxu0
        %596 = vmatpush.bf16.msra.mxu0 0
        %597 = vmatpush.bf16.msra.mxu0 0
        %598 = vmatpush.bf16.msra.mxu0 0
        %599 = vmatpush.bf16.msra.mxu0 0
        %600 = vmatpush.bf16.msra.mxu0 0
        %601 = vmatpush.bf16.msra.mxu0 %v505
        %602 = vmatpush.bf16.msra.mxu0 %v427
        %603 = vmatpush.bf16.msra.mxu0 %v411
        %604 = vmatmul.bf16.gmra.mxu0 %v489
        %v605 = vpop.f32.mrf.mxu0
        %v606 = vadd.f32 %v275, %v605
        %v607 = vpop.f32.mrf.mxu0
        %v608 = vadd.f32 %v280, %v607
        %609 = vdwg.mxu0
        %610 = vmatpush.bf16.msra.mxu0 0
        %611 = vmatpush.bf16.msra.mxu0 0
        %612 = vmatpush.bf16.msra.mxu0 0
        %613 = vmatpush.bf16.msra.mxu0 0
        %614 = vmatpush.bf16.msra.mxu0 0
        %615 = vmatpush.bf16.msra.mxu0 %v508
        %616 = vmatpush.bf16.msra.mxu0 %v428
        %617 = vmatpush.bf16.msra.mxu0 %v412
        %618 = vmatmul.bf16.gmra.mxu0 %v489
        %v619 = vpop.f32.mrf.mxu0
        %v620 = vadd.f32 %v275, %v619
        %v621 = vpop.f32.mrf.mxu0
        %v622 = vadd.f32 %v280, %v621
        %623 = vdwg.mxu0
        %624 = vmatpush.bf16.msra.mxu0 0
        %625 = vmatpush.bf16.msra.mxu0 0
        %626 = vmatpush.bf16.msra.mxu0 0
        %627 = vmatpush.bf16.msra.mxu0 0
        %628 = vmatpush.bf16.msra.mxu0 0
        %629 = vmatpush.bf16.msra.mxu0 %v511
        %630 = vmatpush.bf16.msra.mxu0 %v429
        %631 = vmatpush.bf16.msra.mxu0 %v413
        %632 = vmatmul.bf16.gmra.mxu0 %v489
        %v633 = vpop.f32.mrf.mxu0
        %v634 = vadd.f32 %v275, %v633
        %v635 = vpop.f32.mrf.mxu0
        %v636 = vadd.f32 %v280, %v635
        %637 = vdwg.mxu0
        %638 = vmatpush.bf16.msra.mxu0 0
        %639 = vmatpush.bf16.msra.mxu0 0
        %640 = vmatpush.bf16.msra.mxu0 0
        %641 = vmatpush.bf16.msra.mxu0 0
        %642 = vmatpush.bf16.msra.mxu0 0
        %643 = vmatpush.bf16.msra.mxu0 %v514
        %644 = vmatpush.bf16.msra.mxu0 %v430
        %645 = vmatpush.bf16.msra.mxu0 %v414
        %646 = vmatmul.bf16.gmra.mxu0 %v489
        %v647 = vpop.f32.mrf.mxu0
        %v648 = vadd.f32 %v275, %v647
        %v649 = vpop.f32.mrf.mxu0
        %v650 = vadd.f32 %v280, %v649
        %651 = vdwg.mxu0
        %652 = vmatpush.bf16.msra.mxu0 0
        %653 = vmatpush.bf16.msra.mxu0 0
        %654 = vmatpush.bf16.msra.mxu0 0
        %655 = vmatpush.bf16.msra.mxu0 0
        %656 = vmatpush.bf16.msra.mxu0 0
        %657 = vmatpush.bf16.msra.mxu0 %v517
        %658 = vmatpush.bf16.msra.mxu0 %v431
        %659 = vmatpush.bf16.msra.mxu0 %v415
        %660 = vmatmul.bf16.gmra.mxu0 %v489
        %v661 = vpop.f32.mrf.mxu0
        %v662 = vadd.f32 %v275, %v661
        %v663 = vpop.f32.mrf.mxu0
        %v664 = vadd.f32 %v280, %v663
        %665 = vdwg.mxu0
        %666 = vmatpush.bf16.msra.mxu0 0
        %667 = vmatpush.bf16.msra.mxu0 0
        %668 = vmatpush.bf16.msra.mxu0 0
        %669 = vmatpush.bf16.msra.mxu0 0
        %670 = vmatpush.bf16.msra.mxu0 0
        %671 = vmatpush.bf16.msra.mxu0 %v520
        %672 = vmatpush.bf16.msra.mxu0 %v432
        %673 = vmatpush.bf16.msra.mxu0 %v416
        %674 = vmatmul.bf16.gmra.mxu0 %v489
        %v675 = vpop.f32.mrf.mxu0
        %v676 = vadd.f32 %v275, %v675
        %v677 = vpop.f32.mrf.mxu0
        %v678 = vadd.f32 %v280, %v677
        %679 = vdwg.mxu0
        %680 = vmatpush.bf16.msra.mxu0 0
        %681 = vmatpush.bf16.msra.mxu0 0
        %682 = vmatpush.bf16.msra.mxu0 0
        %683 = vmatpush.bf16.msra.mxu0 0
        %684 = vmatpush.bf16.msra.mxu0 0
        %685 = vmatpush.bf16.msra.mxu0 %v523
        %686 = vmatpush.bf16.msra.mxu0 %v433
        %687 = vmatpush.bf16.msra.mxu0 %v417
        %688 = vmatmul.bf16.gmra.mxu0 %v489
        %v689 = vpop.f32.mrf.mxu0
        %v690 = vadd.f32 %v275, %v689
        %v691 = vpop.f32.mrf.mxu0
        %v692 = vadd.f32 %v280, %v691
        %693 = vdwg.mxu0
        %694 = vmatpush.bf16.msra.mxu0 0
        %695 = vmatpush.bf16.msra.mxu0 0
        %696 = vmatpush.bf16.msra.mxu0 0
        %697 = vmatpush.bf16.msra.mxu0 0
        %698 = vmatpush.bf16.msra.mxu0 0
        %699 = vmatpush.bf16.msra.mxu0 %v526
        %700 = vmatpush.bf16.msra.mxu0 %v434
        %701 = vmatpush.bf16.msra.mxu0 %v418
        %702 = vmatmul.bf16.gmra.mxu0 %v489
        %v703 = vpop.f32.mrf.mxu0
        %v704 = vadd.f32 %v275, %v703
        %v705 = vpop.f32.mrf.mxu0
        %v706 = vadd.f32 %v280, %v705
        %707 = vdwg.mxu0
        %708 = vmatpush.bf16.msra.mxu0 0
        %709 = vmatpush.bf16.msra.mxu0 0
        %710 = vmatpush.bf16.msra.mxu0 0
        %711 = vmatpush.bf16.msra.mxu0 0
        %712 = vmatpush.bf16.msra.mxu0 0
        %713 = vmatpush.bf16.msra.mxu0 %v529
        %714 = vmatpush.bf16.msra.mxu0 %v435
        %715 = vmatpush.bf16.msra.mxu0 %v419
        %716 = vmatmul.bf16.gmra.mxu0 %v489
        %v717 = vpop.f32.mrf.mxu0
        %v718 = vadd.f32 %v275, %v717
        %v719 = vpop.f32.mrf.mxu0
        %v720 = vadd.f32 %v280, %v719
        %721 = vdwg.mxu0
        %722 = vmatpush.bf16.msra.mxu0 0
        %723 = vmatpush.bf16.msra.mxu0 0
        %724 = vmatpush.bf16.msra.mxu0 0
        %725 = vmatpush.bf16.msra.mxu0 0
        %726 = vmatpush.bf16.msra.mxu0 0
        %727 = vmatpush.bf16.msra.mxu0 %v532
        %728 = vmatpush.bf16.msra.mxu0 %v436
        %729 = vmatpush.bf16.msra.mxu0 %v420
        %730 = vmatmul.bf16.gmra.mxu0 %v489
        %v731 = vpop.f32.mrf.mxu0
        %v732 = vadd.f32 %v275, %v731
        %v733 = vpop.f32.mrf.mxu0
        %v734 = vadd.f32 %v280, %v733
        %735 = vdwg.mxu0
        %736 = vmatpush.bf16.msra.mxu0 0
        %737 = vmatpush.bf16.msra.mxu0 0
        %738 = vmatpush.bf16.msra.mxu0 0
        %739 = vmatpush.bf16.msra.mxu0 0
        %740 = vmatpush.bf16.msra.mxu0 0
        %741 = vmatpush.bf16.msra.mxu0 %v535
        %742 = vmatpush.bf16.msra.mxu0 %v437
        %743 = vmatpush.bf16.msra.mxu0 %v421
        %744 = vmatmul.bf16.gmra.mxu0 %v489
        %v745 = vpop.f32.mrf.mxu0
        %v746 = vadd.f32 %v275, %v745
        %v747 = vpop.f32.mrf.mxu0
        %v748 = vadd.f32 %v280, %v747
        %749 = vdwg.mxu0
        %750 = vmatpush.bf16.msra.mxu0 0
        %751 = vmatpush.bf16.msra.mxu0 0
        %752 = vmatpush.bf16.msra.mxu0 0
        %753 = vmatpush.bf16.msra.mxu0 0
        %754 = vmatpush.bf16.msra.mxu0 0
        %755 = vmatpush.bf16.msra.mxu0 %v538
        %756 = vmatpush.bf16.msra.mxu0 %v438
        %757 = vmatpush.bf16.msra.mxu0 %v422
        %758 = vmatmul.bf16.gmra.mxu0 %v489
        %v759 = vpop.f32.mrf.mxu0
        %v760 = vadd.f32 %v275, %v759
        %v761 = vpop.f32.mrf.mxu0
        %v762 = vadd.f32 %v280, %v761
        %763 = vdwg.mxu0
        %v764 = vmax.f32 %v550, 0.0
        %v765 = vmax.f32 %v564, 0.0
        %v766 = vmax.f32 %v578, 0.0
        %v767 = vmax.f32 %v592, 0.0
        %v768 = vmax.f32 %v606, 0.0
        %v769 = vmax.f32 %v620, 0.0
        %v770 = vmax.f32 %v634, 0.0
        %v771 = vmax.f32 %v648, 0.0
        %v772 = vmax.f32 %v662, 0.0
        %v773 = vmax.f32 %v676, 0.0
        %v774 = vmax.f32 %v690, 0.0
        %v775 = vmax.f32 %v704, 0.0
        %v776 = vmax.f32 %v718, 0.0
        %v777 = vmax.f32 %v732, 0.0
        %v778 = vmax.f32 %v746, 0.0
        %v779 = vmax.f32 %v760, 0.0
        %v780 = vmax.f32 %v552, 0.0
        %v781 = vmax.f32 %v566, 0.0
        %v782 = vmax.f32 %v580, 0.0
        %v783 = vmax.f32 %v594, 0.0
        %v784 = vmax.f32 %v608, 0.0
        %v785 = vmax.f32 %v622, 0.0
        %v786 = vmax.f32 %v636, 0.0
        %v787 = vmax.f32 %v650, 0.0
        %v788 = vmax.f32 %v664, 0.0
        %v789 = vmax.f32 %v678, 0.0
        %v790 = vmax.f32 %v692, 0.0
        %v791 = vmax.f32 %v706, 0.0
        %v792 = vmax.f32 %v720, 0.0
        %v793 = vmax.f32 %v734, 0.0
        %v794 = vmax.f32 %v748, 0.0
        %v795 = vmax.f32 %v762, 0.0
        %v796 = vpack.c.bf16 %v765, %v764
        %v797 = vpack.c.bf16 %v767, %v766
        %v798 = vpack.c.bf16 %v769, %v768
        %v799 = vpack.c.bf16 %v771, %v770
        %v800 = vpack.c.bf16 %v773, %v772
        %v801 = vpack.c.bf16 %v775, %v774
        %v802 = vpack.c.bf16 %v777, %v776
        %v803 = vpack.c.bf16 %v779, %v778
        %v804 = vpack.c.bf16 %v781, %v780
        %v805 = vpack.c.bf16 %v783, %v782
        %v806 = vpack.c.bf16 %v785, %v784
        %v807 = vpack.c.bf16 %v787, %v786
        %v808 = vpack.c.bf16 %v789, %v788
        %v809 = vpack.c.bf16 %v791, %v790
        %v810 = vpack.c.bf16 %v793, %v792
        %v811 = vpack.c.bf16 %v795, %v794
        %812 = vst [vmem:[#allocation2 + $0x8] sm:$0xff] %v796
        %813 = vst [vmem:[#allocation2 + $0x10] sm:$0xff] %v797
        %814 = vst [vmem:[#allocation2 + $0x18] sm:$0xff] %v798
        %815 = vst [vmem:[#allocation2 + $0x20] sm:$0xff] %v799
        %816 = vst [vmem:[#allocation2 + $0x28] sm:$0xff] %v800
        %817 = vst [vmem:[#allocation2 + $0x30] sm:$0xff] %v801
        %818 = vst [vmem:[#allocation2 + $0x38] sm:$0xff] %v802
        %819 = vst [vmem:[#allocation2 + $0x40] sm:$0xff] %v803
        %820 = vst [vmem:[#allocation2 + $0x58] sm:$0x77] %v804
        %821 = vst [vmem:[#allocation2 + $0x60] sm:$0x77] %v805
        %822 = vst [vmem:[#allocation2 + $0x68] sm:$0x77] %v806
        %823 = vst [vmem:[#allocation2 + $0x70] sm:$0x77] %v807
        %824 = vst [vmem:[#allocation2 + $0x78] sm:$0x77] %v808
        %825 = vst [vmem:[#allocation2 + $0x80] sm:$0x77] %v809
        %826 = vst [vmem:[#allocation2 + $0x88] sm:$0x77] %v810
        %827 = vst [vmem:[#allocation2 + $0x90] sm:$0x77] %v811
        %v828 = vld [vmem:[%s2] sm:$0xf]
        %v829 = vld [vmem:[#allocation2] sm:$0xff]
        %v830 = vld [vmem:[#allocation2 + $0x8] sm:$0xff]
        %v831 = vld [vmem:[#allocation2 + $0x10] sm:$0xff]
        %v832 = vld [vmem:[#allocation2 + $0x18] sm:$0xff]
        %v833 = vld [vmem:[#allocation2 + $0x20] sm:$0xff]
        %v834 = vld [vmem:[#allocation2 + $0x28] sm:$0xff]
        %v835 = vld [vmem:[#allocation2 + $0x30] sm:$0xff]
        %v836 = vld [vmem:[#allocation2 + $0x38] sm:$0xff]
        %v837 = vld [vmem:[#allocation2 + $0x50] sm:$0x77]
        %v838 = vld [vmem:[#allocation2 + $0x58] sm:$0x77]
        %v839 = vld [vmem:[#allocation2 + $0x60] sm:$0x77]
        %v840 = vld [vmem:[#allocation2 + $0x68] sm:$0x77]
        %v841 = vld [vmem:[#allocation2 + $0x70] sm:$0x77]
        %v842 = vld [vmem:[#allocation2 + $0x78] sm:$0x77]
        %v843 = vld [vmem:[#allocation2 + $0x80] sm:$0x77]
        %v844 = vld [vmem:[#allocation2 + $0x88] sm:$0x77]
        %s845 = scalar_lea.vmem %s2, 4
        %v846 = vld [vmem:[%s845] sm:$0xf]
        %v847 = vld [vmem:[#allocation2 + $0x40] sm:$0xff]
        %v848 = vld [vmem:[#allocation2 + $0x90] sm:$0x77]
        %v865 = vunpack.c.l.b16 %v830
        %v866 = vunpack.c.h.b16 %v830
        %v867 = vunpack.c.l.b16 %v831
        %v868 = vunpack.c.h.b16 %v831
        %v869 = vunpack.c.l.b16 %v832
        %v870 = vunpack.c.h.b16 %v832
        %v871 = vunpack.c.l.b16 %v833
        %v872 = vunpack.c.h.b16 %v833
        %v873 = vunpack.c.l.b16 %v834
        %v874 = vunpack.c.h.b16 %v834
        %v875 = vunpack.c.l.b16 %v835
        %v876 = vunpack.c.h.b16 %v835
        %v877 = vunpack.c.l.b16 %v836
        %v878 = vunpack.c.h.b16 %v836
        %v879 = vunpack.c.l.b16 %v847
        %v880 = vunpack.c.h.b16 %v847
        %v881 = vunpack.c.l.b16 %v838
        %v882 = vunpack.c.h.b16 %v838
        %v883 = vunpack.c.l.b16 %v839
        %v884 = vunpack.c.h.b16 %v839
        %v885 = vunpack.c.l.b16 %v840
        %v886 = vunpack.c.h.b16 %v840
        %v887 = vunpack.c.l.b16 %v841
        %v888 = vunpack.c.h.b16 %v841
        %v889 = vunpack.c.l.b16 %v842
        %v890 = vunpack.c.h.b16 %v842
        %v891 = vunpack.c.l.b16 %v843
        %v892 = vunpack.c.h.b16 %v843
        %v893 = vunpack.c.l.b16 %v844
        %v894 = vunpack.c.h.b16 %v844
        %v895 = vunpack.c.l.b16 %v848
        %v896 = vunpack.c.h.b16 %v848
        %v897 = vpack.c.b16 %v881, %v865
        %v898 = vpack.c.b16 %v882, %v866
        %v899 = vpack.c.b16 %v883, %v867
        %v900 = vpack.c.b16 %v884, %v868
        %v901 = vpack.c.b16 %v885, %v869
        %v902 = vpack.c.b16 %v886, %v870
        %v903 = vpack.c.b16 %v887, %v871
        %v904 = vpack.c.b16 %v888, %v872
        %v905 = vpack.c.b16 %v889, %v873
        %v906 = vpack.c.b16 %v890, %v874
        %v907 = vpack.c.b16 %v891, %v875
        %v908 = vpack.c.b16 %v892, %v876
        %v909 = vpack.c.b16 %v893, %v877
        %v910 = vpack.c.b16 %v894, %v878
        %v911 = vpack.c.b16 %v895, %v879
        %v912 = vpack.c.b16 %v896, %v880
        %vm913 = vcmask 113664
        %v915 = vsel %vm913, %v846, 0
        %vm917 = vcmask 1046528
        %v919 = vsel %vm917, %v897, 0
        %v922 = vsel %vm917, %v898, 0
        %v925 = vsel %vm917, %v899, 0
        %v928 = vsel %vm917, %v900, 0
        %v931 = vsel %vm917, %v901, 0
        %v934 = vsel %vm917, %v902, 0
        %v937 = vsel %vm917, %v903, 0
        %v940 = vsel %vm917, %v904, 0
        %v943 = vsel %vm917, %v905, 0
        %v946 = vsel %vm917, %v906, 0
        %v949 = vsel %vm917, %v907, 0
        %v952 = vsel %vm917, %v908, 0
        %v955 = vsel %vm917, %v909, 0
        %v958 = vsel %vm917, %v910, 0
        %v961 = vsel %vm917, %v911, 0
        %v964 = vsel %vm917, %v912, 0
        %966 = vmatpush.bf16.msra.mxu0 0
        %967 = vmatpush.bf16.msra.mxu0 0
        %968 = vmatpush.bf16.msra.mxu0 0
        %969 = vmatpush.bf16.msra.mxu0 0
        %970 = vmatpush.bf16.msra.mxu0 0
        %971 = vmatpush.bf16.msra.mxu0 0
        %972 = vmatpush.bf16.msra.mxu0 0
        %973 = vmatpush.bf16.msra.mxu0 %v919
        %974 = vmatmul.bf16.gmra.mxu0 %v915
        %v975 = vpop.f32.mrf.mxu0
        %v976 = vadd.f32 0.0, %v975
        %v977 = vpop.f32.mrf.mxu0
        %978 = vdwg.mxu0
        %979 = vmatpush.bf16.msra.mxu0 0
        %980 = vmatpush.bf16.msra.mxu0 0
        %981 = vmatpush.bf16.msra.mxu0 0
        %982 = vmatpush.bf16.msra.mxu0 0
        %983 = vmatpush.bf16.msra.mxu0 0
        %984 = vmatpush.bf16.msra.mxu0 0
        %985 = vmatpush.bf16.msra.mxu0 0
        %986 = vmatpush.bf16.msra.mxu0 %v922
        %987 = vmatmul.bf16.gmra.mxu0 %v915
        %v988 = vpop.f32.mrf.mxu0
        %v989 = vadd.f32 0.0, %v988
        %v990 = vpop.f32.mrf.mxu0
        %991 = vdwg.mxu0
        %992 = vmatpush.bf16.msra.mxu0 0
        %993 = vmatpush.bf16.msra.mxu0 0
        %994 = vmatpush.bf16.msra.mxu0 0
        %995 = vmatpush.bf16.msra.mxu0 0
        %996 = vmatpush.bf16.msra.mxu0 0
        %997 = vmatpush.bf16.msra.mxu0 0
        %998 = vmatpush.bf16.msra.mxu0 0
        %999 = vmatpush.bf16.msra.mxu0 %v925
        %1000 = vmatmul.bf16.gmra.mxu0 %v915
        %v1001 = vpop.f32.mrf.mxu0
        %v1002 = vadd.f32 0.0, %v1001
        %v1003 = vpop.f32.mrf.mxu0
        %1004 = vdwg.mxu0
        %1005 = vmatpush.bf16.msra.mxu0 0
        %1006 = vmatpush.bf16.msra.mxu0 0
        %1007 = vmatpush.bf16.msra.mxu0 0
        %1008 = vmatpush.bf16.msra.mxu0 0
        %1009 = vmatpush.bf16.msra.mxu0 0
        %1010 = vmatpush.bf16.msra.mxu0 0
        %1011 = vmatpush.bf16.msra.mxu0 0
        %1012 = vmatpush.bf16.msra.mxu0 %v928
        %1013 = vmatmul.bf16.gmra.mxu0 %v915
        %v1014 = vpop.f32.mrf.mxu0
        %v1015 = vadd.f32 0.0, %v1014
        %v1016 = vpop.f32.mrf.mxu0
        %1017 = vdwg.mxu0
        %1018 = vmatpush.bf16.msra.mxu0 0
        %1019 = vmatpush.bf16.msra.mxu0 0
        %1020 = vmatpush.bf16.msra.mxu0 0
        %1021 = vmatpush.bf16.msra.mxu0 0
        %1022 = vmatpush.bf16.msra.mxu0 0
        %1023 = vmatpush.bf16.msra.mxu0 0
        %1024 = vmatpush.bf16.msra.mxu0 0
        %1025 = vmatpush.bf16.msra.mxu0 %v931
        %1026 = vmatmul.bf16.gmra.mxu0 %v915
        %v1027 = vpop.f32.mrf.mxu0
        %v1028 = vadd.f32 0.0, %v1027
        %v1029 = vpop.f32.mrf.mxu0
        %1030 = vdwg.mxu0
        %1031 = vmatpush.bf16.msra.mxu0 0
        %1032 = vmatpush.bf16.msra.mxu0 0
        %1033 = vmatpush.bf16.msra.mxu0 0
        %1034 = vmatpush.bf16.msra.mxu0 0
        %1035 = vmatpush.bf16.msra.mxu0 0
        %1036 = vmatpush.bf16.msra.mxu0 0
        %1037 = vmatpush.bf16.msra.mxu0 0
        %1038 = vmatpush.bf16.msra.mxu0 %v934
        %1039 = vmatmul.bf16.gmra.mxu0 %v915
        %v1040 = vpop.f32.mrf.mxu0
        %v1041 = vadd.f32 0.0, %v1040
        %v1042 = vpop.f32.mrf.mxu0
        %1043 = vdwg.mxu0
        %1044 = vmatpush.bf16.msra.mxu0 0
        %1045 = vmatpush.bf16.msra.mxu0 0
        %1046 = vmatpush.bf16.msra.mxu0 0
        %1047 = vmatpush.bf16.msra.mxu0 0
        %1048 = vmatpush.bf16.msra.mxu0 0
        %1049 = vmatpush.bf16.msra.mxu0 0
        %1050 = vmatpush.bf16.msra.mxu0 0
        %1051 = vmatpush.bf16.msra.mxu0 %v937
        %1052 = vmatmul.bf16.gmra.mxu0 %v915
        %v1053 = vpop.f32.mrf.mxu0
        %v1054 = vadd.f32 0.0, %v1053
        %v1055 = vpop.f32.mrf.mxu0
        %1056 = vdwg.mxu0
        %1057 = vmatpush.bf16.msra.mxu0 0
        %1058 = vmatpush.bf16.msra.mxu0 0
        %1059 = vmatpush.bf16.msra.mxu0 0
        %1060 = vmatpush.bf16.msra.mxu0 0
        %1061 = vmatpush.bf16.msra.mxu0 0
        %1062 = vmatpush.bf16.msra.mxu0 0
        %1063 = vmatpush.bf16.msra.mxu0 0
        %1064 = vmatpush.bf16.msra.mxu0 %v940
        %1065 = vmatmul.bf16.gmra.mxu0 %v915
        %v1066 = vpop.f32.mrf.mxu0
        %v1067 = vadd.f32 0.0, %v1066
        %v1068 = vpop.f32.mrf.mxu0
        %1069 = vdwg.mxu0
        %1070 = vmatpush.bf16.msra.mxu0 0
        %1071 = vmatpush.bf16.msra.mxu0 0
        %1072 = vmatpush.bf16.msra.mxu0 0
        %1073 = vmatpush.bf16.msra.mxu0 0
        %1074 = vmatpush.bf16.msra.mxu0 0
        %1075 = vmatpush.bf16.msra.mxu0 0
        %1076 = vmatpush.bf16.msra.mxu0 0
        %1077 = vmatpush.bf16.msra.mxu0 %v943
        %1078 = vmatmul.bf16.gmra.mxu0 %v915
        %v1079 = vpop.f32.mrf.mxu0
        %v1080 = vadd.f32 0.0, %v1079
        %v1081 = vpop.f32.mrf.mxu0
        %1082 = vdwg.mxu0
        %1083 = vmatpush.bf16.msra.mxu0 0
        %1084 = vmatpush.bf16.msra.mxu0 0
        %1085 = vmatpush.bf16.msra.mxu0 0
        %1086 = vmatpush.bf16.msra.mxu0 0
        %1087 = vmatpush.bf16.msra.mxu0 0
        %1088 = vmatpush.bf16.msra.mxu0 0
        %1089 = vmatpush.bf16.msra.mxu0 0
        %1090 = vmatpush.bf16.msra.mxu0 %v946
        %1091 = vmatmul.bf16.gmra.mxu0 %v915
        %v1092 = vpop.f32.mrf.mxu0
        %v1093 = vadd.f32 0.0, %v1092
        %v1094 = vpop.f32.mrf.mxu0
        %1095 = vdwg.mxu0
        %1096 = vmatpush.bf16.msra.mxu0 0
        %1097 = vmatpush.bf16.msra.mxu0 0
        %1098 = vmatpush.bf16.msra.mxu0 0
        %1099 = vmatpush.bf16.msra.mxu0 0
        %1100 = vmatpush.bf16.msra.mxu0 0
        %1101 = vmatpush.bf16.msra.mxu0 0
        %1102 = vmatpush.bf16.msra.mxu0 0
        %1103 = vmatpush.bf16.msra.mxu0 %v949
        %1104 = vmatmul.bf16.gmra.mxu0 %v915
        %v1105 = vpop.f32.mrf.mxu0
        %v1106 = vadd.f32 0.0, %v1105
        %v1107 = vpop.f32.mrf.mxu0
        %1108 = vdwg.mxu0
        %1109 = vmatpush.bf16.msra.mxu0 0
        %1110 = vmatpush.bf16.msra.mxu0 0
        %1111 = vmatpush.bf16.msra.mxu0 0
        %1112 = vmatpush.bf16.msra.mxu0 0
        %1113 = vmatpush.bf16.msra.mxu0 0
        %1114 = vmatpush.bf16.msra.mxu0 0
        %1115 = vmatpush.bf16.msra.mxu0 0
        %1116 = vmatpush.bf16.msra.mxu0 %v952
        %1117 = vmatmul.bf16.gmra.mxu0 %v915
        %v1118 = vpop.f32.mrf.mxu0
        %v1119 = vadd.f32 0.0, %v1118
        %v1120 = vpop.f32.mrf.mxu0
        %1121 = vdwg.mxu0
        %1122 = vmatpush.bf16.msra.mxu0 0
        %1123 = vmatpush.bf16.msra.mxu0 0
        %1124 = vmatpush.bf16.msra.mxu0 0
        %1125 = vmatpush.bf16.msra.mxu0 0
        %1126 = vmatpush.bf16.msra.mxu0 0
        %1127 = vmatpush.bf16.msra.mxu0 0
        %1128 = vmatpush.bf16.msra.mxu0 0
        %1129 = vmatpush.bf16.msra.mxu0 %v955
        %1130 = vmatmul.bf16.gmra.mxu0 %v915
        %v1131 = vpop.f32.mrf.mxu0
        %v1132 = vadd.f32 0.0, %v1131
        %v1133 = vpop.f32.mrf.mxu0
        %1134 = vdwg.mxu0
        %1135 = vmatpush.bf16.msra.mxu0 0
        %1136 = vmatpush.bf16.msra.mxu0 0
        %1137 = vmatpush.bf16.msra.mxu0 0
        %1138 = vmatpush.bf16.msra.mxu0 0
        %1139 = vmatpush.bf16.msra.mxu0 0
        %1140 = vmatpush.bf16.msra.mxu0 0
        %1141 = vmatpush.bf16.msra.mxu0 0
        %1142 = vmatpush.bf16.msra.mxu0 %v958
        %1143 = vmatmul.bf16.gmra.mxu0 %v915
        %v1144 = vpop.f32.mrf.mxu0
        %v1145 = vadd.f32 0.0, %v1144
        %v1146 = vpop.f32.mrf.mxu0
        %1147 = vdwg.mxu0
        %1148 = vmatpush.bf16.msra.mxu0 0
        %1149 = vmatpush.bf16.msra.mxu0 0
        %1150 = vmatpush.bf16.msra.mxu0 0
        %1151 = vmatpush.bf16.msra.mxu0 0
        %1152 = vmatpush.bf16.msra.mxu0 0
        %1153 = vmatpush.bf16.msra.mxu0 0
        %1154 = vmatpush.bf16.msra.mxu0 0
        %1155 = vmatpush.bf16.msra.mxu0 %v961
        %1156 = vmatmul.bf16.gmra.mxu0 %v915
        %v1157 = vpop.f32.mrf.mxu0
        %v1158 = vadd.f32 0.0, %v1157
        %v1159 = vpop.f32.mrf.mxu0
        %1160 = vdwg.mxu0
        %1161 = vmatpush.bf16.msra.mxu0 0
        %1162 = vmatpush.bf16.msra.mxu0 0
        %1163 = vmatpush.bf16.msra.mxu0 0
        %1164 = vmatpush.bf16.msra.mxu0 0
        %1165 = vmatpush.bf16.msra.mxu0 0
        %1166 = vmatpush.bf16.msra.mxu0 0
        %1167 = vmatpush.bf16.msra.mxu0 0
        %1168 = vmatpush.bf16.msra.mxu0 %v964
        %1169 = vmatmul.bf16.gmra.mxu0 %v915
        %v1170 = vpop.f32.mrf.mxu0
        %v1171 = vadd.f32 0.0, %v1170
        %v1172 = vpop.f32.mrf.mxu0
        %1173 = vdwg.mxu0
        %v1176 = vunpack.c.l.b16 %v829
        %v1177 = vunpack.c.h.b16 %v829
        %v1178 = vunpack.c.l.b16 %v837
        %v1179 = vunpack.c.h.b16 %v837
        %v1180 = vpack.c.b16 %v1178, %v1176
        %v1181 = vpack.c.b16 %v1179, %v1177
        %v1183 = vsel %vm913, %v828, 0
        %v1186 = vsel %vm917, %v1180, 0
        %v1189 = vsel %vm917, %v1181, 0
        %1191 = vmatpush.bf16.msra.mxu0 0
        %1192 = vmatpush.bf16.msra.mxu0 0
        %1193 = vmatpush.bf16.msra.mxu0 0
        %1194 = vmatpush.bf16.msra.mxu0 0
        %1195 = vmatpush.bf16.msra.mxu0 0
        %1196 = vmatpush.bf16.msra.mxu0 0
        %1197 = vmatpush.bf16.msra.mxu0 0
        %1198 = vmatpush.bf16.msra.mxu0 %v1186
        %1199 = vmatmul.bf16.gmra.mxu0 %v1183
        %v1200 = vpop.f32.mrf.mxu0
        %v1201 = vadd.f32 %v976, %v1200
        %v1202 = vpop.f32.mrf.mxu0
        %1203 = vdwg.mxu0
        %1204 = vmatpush.bf16.msra.mxu0 0
        %1205 = vmatpush.bf16.msra.mxu0 0
        %1206 = vmatpush.bf16.msra.mxu0 0
        %1207 = vmatpush.bf16.msra.mxu0 0
        %1208 = vmatpush.bf16.msra.mxu0 0
        %1209 = vmatpush.bf16.msra.mxu0 0
        %1210 = vmatpush.bf16.msra.mxu0 0
        %1211 = vmatpush.bf16.msra.mxu0 %v1189
        %1212 = vmatmul.bf16.gmra.mxu0 %v1183
        %v1213 = vpop.f32.mrf.mxu0
        %v1214 = vadd.f32 %v989, %v1213
        %v1215 = vpop.f32.mrf.mxu0
        %1216 = vdwg.mxu0
        %1217 = vmatpush.bf16.msra.mxu0 0
        %1218 = vmatpush.bf16.msra.mxu0 0
        %1219 = vmatpush.bf16.msra.mxu0 0
        %1220 = vmatpush.bf16.msra.mxu0 0
        %1221 = vmatpush.bf16.msra.mxu0 0
        %1222 = vmatpush.bf16.msra.mxu0 0
        %1223 = vmatpush.bf16.msra.mxu0 0
        %1224 = vmatpush.bf16.msra.mxu0 %v919
        %1225 = vmatmul.bf16.gmra.mxu0 %v1183
        %v1226 = vpop.f32.mrf.mxu0
        %v1227 = vadd.f32 %v1002, %v1226
        %v1228 = vpop.f32.mrf.mxu0
        %1229 = vdwg.mxu0
        %1230 = vmatpush.bf16.msra.mxu0 0
        %1231 = vmatpush.bf16.msra.mxu0 0
        %1232 = vmatpush.bf16.msra.mxu0 0
        %1233 = vmatpush.bf16.msra.mxu0 0
        %1234 = vmatpush.bf16.msra.mxu0 0
        %1235 = vmatpush.bf16.msra.mxu0 0
        %1236 = vmatpush.bf16.msra.mxu0 0
        %1237 = vmatpush.bf16.msra.mxu0 %v922
        %1238 = vmatmul.bf16.gmra.mxu0 %v1183
        %v1239 = vpop.f32.mrf.mxu0
        %v1240 = vadd.f32 %v1015, %v1239
        %v1241 = vpop.f32.mrf.mxu0
        %1242 = vdwg.mxu0
        %1243 = vmatpush.bf16.msra.mxu0 0
        %1244 = vmatpush.bf16.msra.mxu0 0
        %1245 = vmatpush.bf16.msra.mxu0 0
        %1246 = vmatpush.bf16.msra.mxu0 0
        %1247 = vmatpush.bf16.msra.mxu0 0
        %1248 = vmatpush.bf16.msra.mxu0 0
        %1249 = vmatpush.bf16.msra.mxu0 0
        %1250 = vmatpush.bf16.msra.mxu0 %v925
        %1251 = vmatmul.bf16.gmra.mxu0 %v1183
        %v1252 = vpop.f32.mrf.mxu0
        %v1253 = vadd.f32 %v1028, %v1252
        %v1254 = vpop.f32.mrf.mxu0
        %1255 = vdwg.mxu0
        %1256 = vmatpush.bf16.msra.mxu0 0
        %1257 = vmatpush.bf16.msra.mxu0 0
        %1258 = vmatpush.bf16.msra.mxu0 0
        %1259 = vmatpush.bf16.msra.mxu0 0
        %1260 = vmatpush.bf16.msra.mxu0 0
        %1261 = vmatpush.bf16.msra.mxu0 0
        %1262 = vmatpush.bf16.msra.mxu0 0
        %1263 = vmatpush.bf16.msra.mxu0 %v928
        %1264 = vmatmul.bf16.gmra.mxu0 %v1183
        %v1265 = vpop.f32.mrf.mxu0
        %v1266 = vadd.f32 %v1041, %v1265
        %v1267 = vpop.f32.mrf.mxu0
        %1268 = vdwg.mxu0
        %1269 = vmatpush.bf16.msra.mxu0 0
        %1270 = vmatpush.bf16.msra.mxu0 0
        %1271 = vmatpush.bf16.msra.mxu0 0
        %1272 = vmatpush.bf16.msra.mxu0 0
        %1273 = vmatpush.bf16.msra.mxu0 0
        %1274 = vmatpush.bf16.msra.mxu0 0
        %1275 = vmatpush.bf16.msra.mxu0 0
        %1276 = vmatpush.bf16.msra.mxu0 %v931
        %1277 = vmatmul.bf16.gmra.mxu0 %v1183
        %v1278 = vpop.f32.mrf.mxu0
        %v1279 = vadd.f32 %v1054, %v1278
        %v1280 = vpop.f32.mrf.mxu0
        %1281 = vdwg.mxu0
        %1282 = vmatpush.bf16.msra.mxu0 0
        %1283 = vmatpush.bf16.msra.mxu0 0
        %1284 = vmatpush.bf16.msra.mxu0 0
        %1285 = vmatpush.bf16.msra.mxu0 0
        %1286 = vmatpush.bf16.msra.mxu0 0
        %1287 = vmatpush.bf16.msra.mxu0 0
        %1288 = vmatpush.bf16.msra.mxu0 0
        %1289 = vmatpush.bf16.msra.mxu0 %v934
        %1290 = vmatmul.bf16.gmra.mxu0 %v1183
        %v1291 = vpop.f32.mrf.mxu0
        %v1292 = vadd.f32 %v1067, %v1291
        %v1293 = vpop.f32.mrf.mxu0
        %1294 = vdwg.mxu0
        %1295 = vmatpush.bf16.msra.mxu0 0
        %1296 = vmatpush.bf16.msra.mxu0 0
        %1297 = vmatpush.bf16.msra.mxu0 0
        %1298 = vmatpush.bf16.msra.mxu0 0
        %1299 = vmatpush.bf16.msra.mxu0 0
        %1300 = vmatpush.bf16.msra.mxu0 0
        %1301 = vmatpush.bf16.msra.mxu0 0
        %1302 = vmatpush.bf16.msra.mxu0 %v937
        %1303 = vmatmul.bf16.gmra.mxu0 %v1183
        %v1304 = vpop.f32.mrf.mxu0
        %v1305 = vadd.f32 %v1080, %v1304
        %v1306 = vpop.f32.mrf.mxu0
        %1307 = vdwg.mxu0
        %1308 = vmatpush.bf16.msra.mxu0 0
        %1309 = vmatpush.bf16.msra.mxu0 0
        %1310 = vmatpush.bf16.msra.mxu0 0
        %1311 = vmatpush.bf16.msra.mxu0 0
        %1312 = vmatpush.bf16.msra.mxu0 0
        %1313 = vmatpush.bf16.msra.mxu0 0
        %1314 = vmatpush.bf16.msra.mxu0 0
        %1315 = vmatpush.bf16.msra.mxu0 %v940
        %1316 = vmatmul.bf16.gmra.mxu0 %v1183
        %v1317 = vpop.f32.mrf.mxu0
        %v1318 = vadd.f32 %v1093, %v1317
        %v1319 = vpop.f32.mrf.mxu0
        %1320 = vdwg.mxu0
        %1321 = vmatpush.bf16.msra.mxu0 0
        %1322 = vmatpush.bf16.msra.mxu0 0
        %1323 = vmatpush.bf16.msra.mxu0 0
        %1324 = vmatpush.bf16.msra.mxu0 0
        %1325 = vmatpush.bf16.msra.mxu0 0
        %1326 = vmatpush.bf16.msra.mxu0 0
        %1327 = vmatpush.bf16.msra.mxu0 0
        %1328 = vmatpush.bf16.msra.mxu0 %v943
        %1329 = vmatmul.bf16.gmra.mxu0 %v1183
        %v1330 = vpop.f32.mrf.mxu0
        %v1331 = vadd.f32 %v1106, %v1330
        %v1332 = vpop.f32.mrf.mxu0
        %1333 = vdwg.mxu0
        %1334 = vmatpush.bf16.msra.mxu0 0
        %1335 = vmatpush.bf16.msra.mxu0 0
        %1336 = vmatpush.bf16.msra.mxu0 0
        %1337 = vmatpush.bf16.msra.mxu0 0
        %1338 = vmatpush.bf16.msra.mxu0 0
        %1339 = vmatpush.bf16.msra.mxu0 0
        %1340 = vmatpush.bf16.msra.mxu0 0
        %1341 = vmatpush.bf16.msra.mxu0 %v946
        %1342 = vmatmul.bf16.gmra.mxu0 %v1183
        %v1343 = vpop.f32.mrf.mxu0
        %v1344 = vadd.f32 %v1119, %v1343
        %v1345 = vpop.f32.mrf.mxu0
        %1346 = vdwg.mxu0
        %1347 = vmatpush.bf16.msra.mxu0 0
        %1348 = vmatpush.bf16.msra.mxu0 0
        %1349 = vmatpush.bf16.msra.mxu0 0
        %1350 = vmatpush.bf16.msra.mxu0 0
        %1351 = vmatpush.bf16.msra.mxu0 0
        %1352 = vmatpush.bf16.msra.mxu0 0
        %1353 = vmatpush.bf16.msra.mxu0 0
        %1354 = vmatpush.bf16.msra.mxu0 %v949
        %1355 = vmatmul.bf16.gmra.mxu0 %v1183
        %v1356 = vpop.f32.mrf.mxu0
        %v1357 = vadd.f32 %v1132, %v1356
        %v1358 = vpop.f32.mrf.mxu0
        %1359 = vdwg.mxu0
        %1360 = vmatpush.bf16.msra.mxu0 0
        %1361 = vmatpush.bf16.msra.mxu0 0
        %1362 = vmatpush.bf16.msra.mxu0 0
        %1363 = vmatpush.bf16.msra.mxu0 0
        %1364 = vmatpush.bf16.msra.mxu0 0
        %1365 = vmatpush.bf16.msra.mxu0 0
        %1366 = vmatpush.bf16.msra.mxu0 0
        %1367 = vmatpush.bf16.msra.mxu0 %v952
        %1368 = vmatmul.bf16.gmra.mxu0 %v1183
        %v1369 = vpop.f32.mrf.mxu0
        %v1370 = vadd.f32 %v1145, %v1369
        %v1371 = vpop.f32.mrf.mxu0
        %1372 = vdwg.mxu0
        %1373 = vmatpush.bf16.msra.mxu0 0
        %1374 = vmatpush.bf16.msra.mxu0 0
        %1375 = vmatpush.bf16.msra.mxu0 0
        %1376 = vmatpush.bf16.msra.mxu0 0
        %1377 = vmatpush.bf16.msra.mxu0 0
        %1378 = vmatpush.bf16.msra.mxu0 0
        %1379 = vmatpush.bf16.msra.mxu0 0
        %1380 = vmatpush.bf16.msra.mxu0 %v955
        %1381 = vmatmul.bf16.gmra.mxu0 %v1183
        %v1382 = vpop.f32.mrf.mxu0
        %v1383 = vadd.f32 %v1158, %v1382
        %v1384 = vpop.f32.mrf.mxu0
        %1385 = vdwg.mxu0
        %1386 = vmatpush.bf16.msra.mxu0 0
        %1387 = vmatpush.bf16.msra.mxu0 0
        %1388 = vmatpush.bf16.msra.mxu0 0
        %1389 = vmatpush.bf16.msra.mxu0 0
        %1390 = vmatpush.bf16.msra.mxu0 0
        %1391 = vmatpush.bf16.msra.mxu0 0
        %1392 = vmatpush.bf16.msra.mxu0 0
        %1393 = vmatpush.bf16.msra.mxu0 %v958
        %1394 = vmatmul.bf16.gmra.mxu0 %v1183
        %v1395 = vpop.f32.mrf.mxu0
        %v1396 = vadd.f32 %v1171, %v1395
        %v1397 = vpop.f32.mrf.mxu0
        %1398 = vdwg.mxu0
        %s1399 = scalar_lea.vmem %s2, 8
        %v1400 = vld [vmem:[%s1399] sm:$0xf]
        %v1401 = vld [vmem:[#allocation2 + $0x10] sm:$0xff]
        %v1402 = vld [vmem:[#allocation2 + $0x18] sm:$0xff]
        %v1403 = vld [vmem:[#allocation2 + $0x20] sm:$0xff]
        %v1404 = vld [vmem:[#allocation2 + $0x28] sm:$0xff]
        %v1405 = vld [vmem:[#allocation2 + $0x30] sm:$0xff]
        %v1406 = vld [vmem:[#allocation2 + $0x38] sm:$0xff]
        %v1407 = vld [vmem:[#allocation2 + $0x40] sm:$0xff]
        %v1408 = vld [vmem:[#allocation2 + $0x48] sm:$0xff]
        %v1409 = vld [vmem:[#allocation2 + $0x60] sm:$0x77]
        %v1410 = vld [vmem:[#allocation2 + $0x68] sm:$0x77]
        %v1411 = vld [vmem:[#allocation2 + $0x70] sm:$0x77]
        %v1412 = vld [vmem:[#allocation2 + $0x78] sm:$0x77]
        %v1413 = vld [vmem:[#allocation2 + $0x80] sm:$0x77]
        %v1414 = vld [vmem:[#allocation2 + $0x88] sm:$0x77]
        %v1415 = vld [vmem:[#allocation2 + $0x90] sm:$0x77]
        %v1416 = vld [vmem:[#allocation2 + $0x98] sm:$0x77]
        %v1433 = vunpack.c.l.b16 %v1401
        %v1434 = vunpack.c.h.b16 %v1401
        %v1435 = vunpack.c.l.b16 %v1402
        %v1436 = vunpack.c.h.b16 %v1402
        %v1437 = vunpack.c.l.b16 %v1403
        %v1438 = vunpack.c.h.b16 %v1403
        %v1439 = vunpack.c.l.b16 %v1404
        %v1440 = vunpack.c.h.b16 %v1404
        %v1441 = vunpack.c.l.b16 %v1405
        %v1442 = vunpack.c.h.b16 %v1405
        %v1443 = vunpack.c.l.b16 %v1406
        %v1444 = vunpack.c.h.b16 %v1406
        %v1445 = vunpack.c.l.b16 %v1407
        %v1446 = vunpack.c.h.b16 %v1407
        %v1447 = vunpack.c.l.b16 %v1408
        %v1448 = vunpack.c.h.b16 %v1408
        %v1449 = vunpack.c.l.b16 %v1409
        %v1450 = vunpack.c.h.b16 %v1409
        %v1451 = vunpack.c.l.b16 %v1410
        %v1452 = vunpack.c.h.b16 %v1410
        %v1453 = vunpack.c.l.b16 %v1411
        %v1454 = vunpack.c.h.b16 %v1411
        %v1455 = vunpack.c.l.b16 %v1412
        %v1456 = vunpack.c.h.b16 %v1412
        %v1457 = vunpack.c.l.b16 %v1413
        %v1458 = vunpack.c.h.b16 %v1413
        %v1459 = vunpack.c.l.b16 %v1414
        %v1460 = vunpack.c.h.b16 %v1414
        %v1461 = vunpack.c.l.b16 %v1415
        %v1462 = vunpack.c.h.b16 %v1415
        %v1463 = vunpack.c.l.b16 %v1416
        %v1464 = vunpack.c.h.b16 %v1416
        %v1465 = vpack.c.b16 %v1449, %v1433
        %v1466 = vpack.c.b16 %v1450, %v1434
        %v1467 = vpack.c.b16 %v1451, %v1435
        %v1468 = vpack.c.b16 %v1452, %v1436
        %v1469 = vpack.c.b16 %v1453, %v1437
        %v1470 = vpack.c.b16 %v1454, %v1438
        %v1471 = vpack.c.b16 %v1455, %v1439
        %v1472 = vpack.c.b16 %v1456, %v1440
        %v1473 = vpack.c.b16 %v1457, %v1441
        %v1474 = vpack.c.b16 %v1458, %v1442
        %v1475 = vpack.c.b16 %v1459, %v1443
        %v1476 = vpack.c.b16 %v1460, %v1444
        %v1477 = vpack.c.b16 %v1461, %v1445
        %v1478 = vpack.c.b16 %v1462, %v1446
        %v1479 = vpack.c.b16 %v1463, %v1447
        %v1480 = vpack.c.b16 %v1464, %v1448
        %v1482 = vsel %vm913, %v1400, 0
        %v1485 = vsel %vm917, %v1465, 0
        %v1488 = vsel %vm917, %v1466, 0
        %v1491 = vsel %vm917, %v1467, 0
        %v1494 = vsel %vm917, %v1468, 0
        %v1497 = vsel %vm917, %v1469, 0
        %v1500 = vsel %vm917, %v1470, 0
        %v1503 = vsel %vm917, %v1471, 0
        %v1506 = vsel %vm917, %v1472, 0
        %v1509 = vsel %vm917, %v1473, 0
        %v1512 = vsel %vm917, %v1474, 0
        %v1515 = vsel %vm917, %v1475, 0
        %v1518 = vsel %vm917, %v1476, 0
        %v1521 = vsel %vm917, %v1477, 0
        %v1524 = vsel %vm917, %v1478, 0
        %v1527 = vsel %vm917, %v1479, 0
        %v1530 = vsel %vm917, %v1480, 0
        %1532 = vmatpush.bf16.msra.mxu0 0
        %1533 = vmatpush.bf16.msra.mxu0 0
        %1534 = vmatpush.bf16.msra.mxu0 0
        %1535 = vmatpush.bf16.msra.mxu0 0
        %1536 = vmatpush.bf16.msra.mxu0 0
        %1537 = vmatpush.bf16.msra.mxu0 0
        %1538 = vmatpush.bf16.msra.mxu0 0
        %1539 = vmatpush.bf16.msra.mxu0 %v1485
        %1540 = vmatmul.bf16.gmra.mxu0 %v1482
        %v1541 = vpop.f32.mrf.mxu0
        %v1542 = vadd.f32 0.0, %v1541
        %v1543 = vpop.f32.mrf.mxu0
        %1544 = vdwg.mxu0
        %1545 = vmatpush.bf16.msra.mxu0 0
        %1546 = vmatpush.bf16.msra.mxu0 0
        %1547 = vmatpush.bf16.msra.mxu0 0
        %1548 = vmatpush.bf16.msra.mxu0 0
        %1549 = vmatpush.bf16.msra.mxu0 0
        %1550 = vmatpush.bf16.msra.mxu0 0
        %1551 = vmatpush.bf16.msra.mxu0 0
        %1552 = vmatpush.bf16.msra.mxu0 %v1488
        %1553 = vmatmul.bf16.gmra.mxu0 %v1482
        %v1554 = vpop.f32.mrf.mxu0
        %v1555 = vadd.f32 0.0, %v1554
        %v1556 = vpop.f32.mrf.mxu0
        %1557 = vdwg.mxu0
        %1558 = vmatpush.bf16.msra.mxu0 0
        %1559 = vmatpush.bf16.msra.mxu0 0
        %1560 = vmatpush.bf16.msra.mxu0 0
        %1561 = vmatpush.bf16.msra.mxu0 0
        %1562 = vmatpush.bf16.msra.mxu0 0
        %1563 = vmatpush.bf16.msra.mxu0 0
        %1564 = vmatpush.bf16.msra.mxu0 0
        %1565 = vmatpush.bf16.msra.mxu0 %v1491
        %1566 = vmatmul.bf16.gmra.mxu0 %v1482
        %v1567 = vpop.f32.mrf.mxu0
        %v1568 = vadd.f32 0.0, %v1567
        %v1569 = vpop.f32.mrf.mxu0
        %1570 = vdwg.mxu0
        %1571 = vmatpush.bf16.msra.mxu0 0
        %1572 = vmatpush.bf16.msra.mxu0 0
        %1573 = vmatpush.bf16.msra.mxu0 0
        %1574 = vmatpush.bf16.msra.mxu0 0
        %1575 = vmatpush.bf16.msra.mxu0 0
        %1576 = vmatpush.bf16.msra.mxu0 0
        %1577 = vmatpush.bf16.msra.mxu0 0
        %1578 = vmatpush.bf16.msra.mxu0 %v1494
        %1579 = vmatmul.bf16.gmra.mxu0 %v1482
        %v1580 = vpop.f32.mrf.mxu0
        %v1581 = vadd.f32 0.0, %v1580
        %v1582 = vpop.f32.mrf.mxu0
        %1583 = vdwg.mxu0
        %1584 = vmatpush.bf16.msra.mxu0 0
        %1585 = vmatpush.bf16.msra.mxu0 0
        %1586 = vmatpush.bf16.msra.mxu0 0
        %1587 = vmatpush.bf16.msra.mxu0 0
        %1588 = vmatpush.bf16.msra.mxu0 0
        %1589 = vmatpush.bf16.msra.mxu0 0
        %1590 = vmatpush.bf16.msra.mxu0 0
        %1591 = vmatpush.bf16.msra.mxu0 %v1497
        %1592 = vmatmul.bf16.gmra.mxu0 %v1482
        %v1593 = vpop.f32.mrf.mxu0
        %v1594 = vadd.f32 0.0, %v1593
        %v1595 = vpop.f32.mrf.mxu0
        %1596 = vdwg.mxu0
        %1597 = vmatpush.bf16.msra.mxu0 0
        %1598 = vmatpush.bf16.msra.mxu0 0
        %1599 = vmatpush.bf16.msra.mxu0 0
        %1600 = vmatpush.bf16.msra.mxu0 0
        %1601 = vmatpush.bf16.msra.mxu0 0
        %1602 = vmatpush.bf16.msra.mxu0 0
        %1603 = vmatpush.bf16.msra.mxu0 0
        %1604 = vmatpush.bf16.msra.mxu0 %v1500
        %1605 = vmatmul.bf16.gmra.mxu0 %v1482
        %v1606 = vpop.f32.mrf.mxu0
        %v1607 = vadd.f32 0.0, %v1606
        %v1608 = vpop.f32.mrf.mxu0
        %1609 = vdwg.mxu0
        %1610 = vmatpush.bf16.msra.mxu0 0
        %1611 = vmatpush.bf16.msra.mxu0 0
        %1612 = vmatpush.bf16.msra.mxu0 0
        %1613 = vmatpush.bf16.msra.mxu0 0
        %1614 = vmatpush.bf16.msra.mxu0 0
        %1615 = vmatpush.bf16.msra.mxu0 0
        %1616 = vmatpush.bf16.msra.mxu0 0
        %1617 = vmatpush.bf16.msra.mxu0 %v1503
        %1618 = vmatmul.bf16.gmra.mxu0 %v1482
        %v1619 = vpop.f32.mrf.mxu0
        %v1620 = vadd.f32 0.0, %v1619
        %v1621 = vpop.f32.mrf.mxu0
        %1622 = vdwg.mxu0
        %1623 = vmatpush.bf16.msra.mxu0 0
        %1624 = vmatpush.bf16.msra.mxu0 0
        %1625 = vmatpush.bf16.msra.mxu0 0
        %1626 = vmatpush.bf16.msra.mxu0 0
        %1627 = vmatpush.bf16.msra.mxu0 0
        %1628 = vmatpush.bf16.msra.mxu0 0
        %1629 = vmatpush.bf16.msra.mxu0 0
        %1630 = vmatpush.bf16.msra.mxu0 %v1506
        %1631 = vmatmul.bf16.gmra.mxu0 %v1482
        %v1632 = vpop.f32.mrf.mxu0
        %v1633 = vadd.f32 0.0, %v1632
        %v1634 = vpop.f32.mrf.mxu0
        %1635 = vdwg.mxu0
        %1636 = vmatpush.bf16.msra.mxu0 0
        %1637 = vmatpush.bf16.msra.mxu0 0
        %1638 = vmatpush.bf16.msra.mxu0 0
        %1639 = vmatpush.bf16.msra.mxu0 0
        %1640 = vmatpush.bf16.msra.mxu0 0
        %1641 = vmatpush.bf16.msra.mxu0 0
        %1642 = vmatpush.bf16.msra.mxu0 0
        %1643 = vmatpush.bf16.msra.mxu0 %v1509
        %1644 = vmatmul.bf16.gmra.mxu0 %v1482
        %v1645 = vpop.f32.mrf.mxu0
        %v1646 = vadd.f32 0.0, %v1645
        %v1647 = vpop.f32.mrf.mxu0
        %1648 = vdwg.mxu0
        %1649 = vmatpush.bf16.msra.mxu0 0
        %1650 = vmatpush.bf16.msra.mxu0 0
        %1651 = vmatpush.bf16.msra.mxu0 0
        %1652 = vmatpush.bf16.msra.mxu0 0
        %1653 = vmatpush.bf16.msra.mxu0 0
        %1654 = vmatpush.bf16.msra.mxu0 0
        %1655 = vmatpush.bf16.msra.mxu0 0
        %1656 = vmatpush.bf16.msra.mxu0 %v1512
        %1657 = vmatmul.bf16.gmra.mxu0 %v1482
        %v1658 = vpop.f32.mrf.mxu0
        %v1659 = vadd.f32 0.0, %v1658
        %v1660 = vpop.f32.mrf.mxu0
        %1661 = vdwg.mxu0
        %1662 = vmatpush.bf16.msra.mxu0 0
        %1663 = vmatpush.bf16.msra.mxu0 0
        %1664 = vmatpush.bf16.msra.mxu0 0
        %1665 = vmatpush.bf16.msra.mxu0 0
        %1666 = vmatpush.bf16.msra.mxu0 0
        %1667 = vmatpush.bf16.msra.mxu0 0
        %1668 = vmatpush.bf16.msra.mxu0 0
        %1669 = vmatpush.bf16.msra.mxu0 %v1515
        %1670 = vmatmul.bf16.gmra.mxu0 %v1482
        %v1671 = vpop.f32.mrf.mxu0
        %v1672 = vadd.f32 0.0, %v1671
        %v1673 = vpop.f32.mrf.mxu0
        %1674 = vdwg.mxu0
        %1675 = vmatpush.bf16.msra.mxu0 0
        %1676 = vmatpush.bf16.msra.mxu0 0
        %1677 = vmatpush.bf16.msra.mxu0 0
        %1678 = vmatpush.bf16.msra.mxu0 0
        %1679 = vmatpush.bf16.msra.mxu0 0
        %1680 = vmatpush.bf16.msra.mxu0 0
        %1681 = vmatpush.bf16.msra.mxu0 0
        %1682 = vmatpush.bf16.msra.mxu0 %v1518
        %1683 = vmatmul.bf16.gmra.mxu0 %v1482
        %v1684 = vpop.f32.mrf.mxu0
        %v1685 = vadd.f32 0.0, %v1684
        %v1686 = vpop.f32.mrf.mxu0
        %1687 = vdwg.mxu0
        %1688 = vmatpush.bf16.msra.mxu0 0
        %1689 = vmatpush.bf16.msra.mxu0 0
        %1690 = vmatpush.bf16.msra.mxu0 0
        %1691 = vmatpush.bf16.msra.mxu0 0
        %1692 = vmatpush.bf16.msra.mxu0 0
        %1693 = vmatpush.bf16.msra.mxu0 0
        %1694 = vmatpush.bf16.msra.mxu0 0
        %1695 = vmatpush.bf16.msra.mxu0 %v1521
        %1696 = vmatmul.bf16.gmra.mxu0 %v1482
        %v1697 = vpop.f32.mrf.mxu0
        %v1698 = vadd.f32 0.0, %v1697
        %v1699 = vpop.f32.mrf.mxu0
        %1700 = vdwg.mxu0
        %1701 = vmatpush.bf16.msra.mxu0 0
        %1702 = vmatpush.bf16.msra.mxu0 0
        %1703 = vmatpush.bf16.msra.mxu0 0
        %1704 = vmatpush.bf16.msra.mxu0 0
        %1705 = vmatpush.bf16.msra.mxu0 0
        %1706 = vmatpush.bf16.msra.mxu0 0
        %1707 = vmatpush.bf16.msra.mxu0 0
        %1708 = vmatpush.bf16.msra.mxu0 %v1524
        %1709 = vmatmul.bf16.gmra.mxu0 %v1482
        %v1710 = vpop.f32.mrf.mxu0
        %v1711 = vadd.f32 0.0, %v1710
        %v1712 = vpop.f32.mrf.mxu0
        %1713 = vdwg.mxu0
        %1714 = vmatpush.bf16.msra.mxu0 0
        %1715 = vmatpush.bf16.msra.mxu0 0
        %1716 = vmatpush.bf16.msra.mxu0 0
        %1717 = vmatpush.bf16.msra.mxu0 0
        %1718 = vmatpush.bf16.msra.mxu0 0
        %1719 = vmatpush.bf16.msra.mxu0 0
        %1720 = vmatpush.bf16.msra.mxu0 0
        %1721 = vmatpush.bf16.msra.mxu0 %v1527
        %1722 = vmatmul.bf16.gmra.mxu0 %v1482
        %v1723 = vpop.f32.mrf.mxu0
        %v1724 = vadd.f32 0.0, %v1723
        %v1725 = vpop.f32.mrf.mxu0
        %1726 = vdwg.mxu0
        %1727 = vmatpush.bf16.msra.mxu0 0
        %1728 = vmatpush.bf16.msra.mxu0 0
        %1729 = vmatpush.bf16.msra.mxu0 0
        %1730 = vmatpush.bf16.msra.mxu0 0
        %1731 = vmatpush.bf16.msra.mxu0 0
        %1732 = vmatpush.bf16.msra.mxu0 0
        %1733 = vmatpush.bf16.msra.mxu0 0
        %1734 = vmatpush.bf16.msra.mxu0 %v1530
        %1735 = vmatmul.bf16.gmra.mxu0 %v1482
        %v1736 = vpop.f32.mrf.mxu0
        %v1737 = vadd.f32 0.0, %v1736
        %v1738 = vpop.f32.mrf.mxu0
        %1739 = vdwg.mxu0
        %v1740 = vadd.f32 %v1201, %v1542
        %v1741 = vadd.f32 %v1214, %v1555
        %v1742 = vadd.f32 %v1227, %v1568
        %v1743 = vadd.f32 %v1240, %v1581
        %v1744 = vadd.f32 %v1253, %v1594
        %v1745 = vadd.f32 %v1266, %v1607
        %v1746 = vadd.f32 %v1279, %v1620
        %v1747 = vadd.f32 %v1292, %v1633
        %v1748 = vadd.f32 %v1305, %v1646
        %v1749 = vadd.f32 %v1318, %v1659
        %v1750 = vadd.f32 %v1331, %v1672
        %v1751 = vadd.f32 %v1344, %v1685
        %v1752 = vadd.f32 %v1357, %v1698
        %v1753 = vadd.f32 %v1370, %v1711
        %v1754 = vadd.f32 %v1383, %v1724
        %v1755 = vadd.f32 %v1396, %v1737
        %v1756 = vld [vmem:[%s4] sm:$0xff]
        %1758 = vset.pattern.permute.xlu0 0
        %1759 = vperm.xlu0 %1758, %v1756
        %v1760 = vpop.permute.xlu0 %1759
        %v1762 = vadd.f32 %v1740, %v1760
        %v1763 = vadd.f32 %v1741, %v1760
        %v1764 = vadd.f32 %v1742, %v1760
        %v1765 = vadd.f32 %v1743, %v1760
        %v1766 = vadd.f32 %v1744, %v1760
        %v1767 = vadd.f32 %v1745, %v1760
        %v1768 = vadd.f32 %v1746, %v1760
        %v1769 = vadd.f32 %v1747, %v1760
        %v1770 = vadd.f32 %v1748, %v1760
        %v1771 = vadd.f32 %v1749, %v1760
        %v1772 = vadd.f32 %v1750, %v1760
        %v1773 = vadd.f32 %v1751, %v1760
        %v1774 = vadd.f32 %v1752, %v1760
        %v1775 = vadd.f32 %v1753, %v1760
        %v1776 = vadd.f32 %v1754, %v1760
        %v1777 = vadd.f32 %v1755, %v1760
        %v1778 = vmax.f32 %v1762, 0.0
        %v1779 = vmax.f32 %v1763, 0.0
        %v1780 = vmax.f32 %v1764, 0.0
        %v1781 = vmax.f32 %v1765, 0.0
        %v1782 = vmax.f32 %v1766, 0.0
        %v1783 = vmax.f32 %v1767, 0.0
        %v1784 = vmax.f32 %v1768, 0.0
        %v1785 = vmax.f32 %v1769, 0.0
        %v1786 = vmax.f32 %v1770, 0.0
        %v1787 = vmax.f32 %v1771, 0.0
        %v1788 = vmax.f32 %v1772, 0.0
        %v1789 = vmax.f32 %v1773, 0.0
        %v1790 = vmax.f32 %v1774, 0.0
        %v1791 = vmax.f32 %v1775, 0.0
        %v1792 = vmax.f32 %v1776, 0.0
        %v1793 = vmax.f32 %v1777, 0.0
        %1794 = vst [vmem:[%s217] sm:$0xff] %v1778
        %1795 = vst [vmem:[%s217 + $0x8] sm:$0xff] %v1779
        %1796 = vst [vmem:[%s217 + $0x10] sm:$0xff] %v1780
        %1797 = vst [vmem:[%s217 + $0x18] sm:$0xff] %v1781
        %1798 = vst [vmem:[%s217 + $0x20] sm:$0xff] %v1782
        %1799 = vst [vmem:[%s217 + $0x28] sm:$0xff] %v1783
        %1800 = vst [vmem:[%s217 + $0x30] sm:$0xff] %v1784
        %1801 = vst [vmem:[%s217 + $0x38] sm:$0xff] %v1785
        %1802 = vst [vmem:[%s217 + $0x40] sm:$0xff] %v1786
        %1803 = vst [vmem:[%s217 + $0x48] sm:$0xff] %v1787
        %1804 = vst [vmem:[%s217 + $0x50] sm:$0xff] %v1788
        %1805 = vst [vmem:[%s217 + $0x58] sm:$0xff] %v1789
        %1806 = vst [vmem:[%s217 + $0x60] sm:$0xff] %v1790
        %1807 = vst [vmem:[%s217 + $0x68] sm:$0xff] %v1791
        %1808 = vst [vmem:[%s217 + $0x70] sm:$0xff] %v1792
        %1809 = vst [vmem:[%s217 + $0x78] sm:$0xff] %v1793
        %s1810 = sand.u32 %s137, 1
        %s1811 = scalar_lea.sflag [#allocation4], %s1810
        %s1812 = sand.u32 %s137, 1
        %s1813 = smul.addr %s1812, 128
        %s1814 = scalar_lea.vmem [#allocation3], %s1813
        // Predicated region
        $region41: #{tpu_custom_call.1} parent=39 // pred_check
          %p1815 = pneg %p147
        $region42: #{tpu_custom_call.1} parent=39 // pred_check_branch
          %1817 = sbr.rel (%p1815) target = $region44
        $region43: #{tpu_custom_call.1} parent=39 // pred_region
          %1819 = vsyncadd %s1811, 0
          %s1820 = smul.addr %s19, 16
          %s1821 = smul.addr %s1820, 8
          %s1822 = scalar_lea.hbm %s5, %s1821
          %s1824 = sshll.u32 %s1814, 4
          %s1825 = int_to_ptr.vmem [resolvable:$true] %s1824
          %s1826 = sshll.u32 %s1822, 4
          %s1827 = int_to_ptr.hbm [resolvable:$true] %s1826
          %1829 = dma.vmem_to_hbm [thread:$0]  %s1825, 2048, %s1827, %s1811
        $region44: #{tpu_custom_call.1} parent=39 // pred_fallthru
          _
      $region40: #{tpu_custom_call.1} parent=5 // pred_fallthru
        _
      %p1830 = scmp.le.s32.totalorder 2, %s14
      // Predicated region
      $region45: #{tpu_custom_call.1} parent=5 // pred_check
        %p1831 = pneg %p1830
      $region46: #{tpu_custom_call.1} parent=5 // pred_check_branch
        %1833 = sbr.rel (%p1831) target = $region48
      $region47: #{tpu_custom_call.1} parent=5 // pred_region
        %s1834 = ssub.s32 %s14, 2
        // Predicated region
        $region49: #{tpu_custom_call.1} parent=47 // pred_check
          %p1835 = pneg %p153
        $region50: #{tpu_custom_call.1} parent=47 // pred_check_branch
          %1837 = sbr.rel (%p1835) target = $region52
        $region51: #{tpu_custom_call.1} parent=47 // pred_region
          %s1838 = sand.u32 %s138, 1
          %s1839 = scalar_lea.sflag [#allocation4], %s1838
          %s1840 = sand.u32 %s138, 1
          %s1841 = smul.addr %s1840, 128
          %s1842 = scalar_lea.vmem [#allocation3], %s1841
          %1844 = dma.done %s1839, 2048
        $region52: #{tpu_custom_call.1} parent=47 // pred_fallthru
          _
      $region48: #{tpu_custom_call.1} parent=5 // pred_fallthru
        _
    $region6: #{tpu_custom_call.1} parent=1 // loop_footer
      %s18 = sadd.s32 1, %s14
    $region7: #{tpu_custom_call.1} parent=1 // loop_footer_branch
      %13 = sbr.rel target = $region3
    $region8: #{tpu_custom_call.1} parent=1 // loop_exit
      _
    %1845 = vsyncpa [#allocation4], 1
    %s1846 = scalar_lea.sflag [#allocation4], 1
    %1847 = vsyncpa %s1846, 1

</llo_original>
